<compile_context>
chip_gen: v6e
topology: v6e:2x2x1
jax: 0.10.0
libtpu: 0.0.40
codegen_flags: <defaults>
</compile_context>

<pallas_src>
import math
import functools

import jax
import jax.numpy as jnp
import numpy as np
from jax.experimental import pallas as pl
from jax.experimental.pallas import tpu as pltpu

# ----------------------------- model dims -----------------------------------
B = 2           # batch
S = 8           # sequence length
D_MODEL = 32    # d_model
NUM_HEADS = 4
D_K = D_MODEL // NUM_HEADS
D_FF = 64
LN_EPS = 1e-5   # PyTorch nn.LayerNorm default

# ------------------------ packed weight-slab layout --------------------------
SLAB_LANES = 128                      # lane-pad every row group to 128
_R_WQKV = 0                           # (D, 3D)   rows [  0,  32)
_R_WO = _R_WQKV + D_MODEL             # (D, D)    rows [ 32,  64)
_R_W1 = _R_WO + D_MODEL               # (D, DFF)  rows [ 64,  96)
_R_W2 = _R_W1 + D_MODEL               # (DFF, D)  rows [ 96, 160)
_R_VEC = _R_W2 + D_FF                 # (8, *)    rows [160, 168)
SLAB_ROWS = _R_VEC + 8                # 168 rows (multiple of 8)

# rows inside the vec block
_V_BQKV, _V_BO, _V_B1, _V_B2, _V_G1, _V_BETA1, _V_G2, _V_BETA2 = range(8)


# ------------------------------- kernel --------------------------------------
def _transformer_block_kernel(x_ref, slab_ref, o_ref,
                              *, batch, seq, num_heads, d_k, d_ff):
    d_model = num_heads * d_k
    n_rows = batch * seq

    x = x_ref[...].astype(jnp.float32)                          # (B*S, D)

    # --- static slices of the single packed slab (sublane-aligned rows) ---
    wqkv = slab_ref[_R_WQKV:_R_WQKV + d_model, 0:3 * d_model]   # (D, 3D)
    wo = slab_ref[_R_WO:_R_WO + d_model, 0:d_model]             # (D, D)
    w1 = slab_ref[_R_W1:_R_W1 + d_model, 0:d_ff]                # (D, DFF)
    w2 = slab_ref[_R_W2:_R_W2 + d_ff, 0:d_model]                # (DFF, D)
    vecs = slab_ref[_R_VEC:_R_VEC + 8, :]                       # (8, 128), 1 vreg

    bqkv = vecs[_V_BQKV:_V_BQKV + 1, 0:3 * d_model]
    bo = vecs[_V_BO:_V_BO + 1, 0:d_model]
    b1 = vecs[_V_B1:_V_B1 + 1, 0:d_ff]
    b2 = vecs[_V_B2:_V_B2 + 1, 0:d_model]
    g1 = vecs[_V_G1:_V_G1 + 1, 0:d_model]
    beta1 = vecs[_V_BETA1:_V_BETA1 + 1, 0:d_model]
    g2 = vecs[_V_G2:_V_G2 + 1, 0:d_model]
    beta2 = vecs[_V_BETA2:_V_BETA2 + 1, 0:d_model]

    # ---- fused QKV projection: one (B*S, D) @ (D, 3D) matmul ----
    qkv = jnp.dot(x, wqkv, preferred_element_type=jnp.float32) + bqkv
    scale = 1.0 / math.sqrt(d_k)
    q = qkv[:, :d_model] * scale                  # fold 1/sqrt(d_k) into q once
    k = qkv[:, d_model:2 * d_model]
    v = qkv[:, 2 * d_model:3 * d_model]

    q3 = q.reshape(batch, seq, d_model)           # leading-dim splits only
    k3 = k.reshape(batch, seq, d_model)
    v3 = v.reshape(batch, seq, d_model)

    # ---- multi-head attention (static unroll over H=4 heads).
    #      Head outputs are lane-concatenated and projected by W_o ONCE. ----
    # TODO(synk): optional attention mask (mask==0 -> -1e9) not wired in; the
    #             reference forward is exercised with mask=None.
    head_outs = []
    for h in range(num_heads):
        lo = h * d_k
        qh = q3[:, :, lo:lo + d_k]                # (B, S, d_k)
        kh = k3[:, :, lo:lo + d_k]
        vh = v3[:, :, lo:lo + d_k]
        s = jnp.einsum("bqd,bkd->bqk", qh, kh,
                       preferred_element_type=jnp.float32)      # (B, S, S)
        s = s - jnp.max(s, axis=-1, keepdims=True)
        p = jnp.exp(s)
        # one reciprocal per row; approx=False keeps 1e-4 tolerance vs reference
        p = p * pl.reciprocal(jnp.sum(p, axis=-1, keepdims=True), approx=False)
        oh = jnp.einsum("bqk,bkd->bqd", p, vh,
                        preferred_element_type=jnp.float32)     # (B, S, d_k)
        head_outs.append(oh.reshape(n_rows, d_k))
    attn_cat = jnp.concatenate(head_outs, axis=-1)              # (B*S, D)
    attn = jnp.dot(attn_cat, wo, preferred_element_type=jnp.float32) + bo

    # ---- residual + layernorm 1 (dropout is identity in eval) ----
    h1 = x + attn
    mu1 = jnp.mean(h1, axis=-1, keepdims=True)
    var1 = jnp.mean(jnp.square(h1 - mu1), axis=-1, keepdims=True)
    x1 = (h1 - mu1) * jax.lax.rsqrt(var1 + LN_EPS) * g1 + beta1

    # ---- feed-forward ----
    ff = jnp.dot(x1, w1, preferred_element_type=jnp.float32)
    ff = jnp.maximum(ff + b1, 0.0)
    ff = jnp.dot(ff, w2, preferred_element_type=jnp.float32) + b2

    # ---- residual + layernorm 2 ----
    h2 = x1 + ff
    mu2 = jnp.mean(h2, axis=-1, keepdims=True)
    var2 = jnp.mean(jnp.square(h2 - mu2), axis=-1, keepdims=True)
    out = (h2 - mu2) * jax.lax.rsqrt(var2 + LN_EPS) * g2 + beta2

    o_ref[...] = out.astype(o_ref.dtype)


# --------------------------- parameter packing --------------------------------
def pack_params(p):
    """Pack ALL weights / biases / LN params into one (168, 128) f32 slab."""
    d_model = p["wq"].shape[0]
    d_ff = p["w1"].shape[1]

    slab = np.zeros((SLAB_ROWS, SLAB_LANES), np.float32)
    wqkv = np.concatenate([np.asarray(p["wq"]), np.asarray(p["wk"]),
                           np.asarray(p["wv"])], axis=1)
    slab[_R_WQKV:_R_WQKV + d_model, :3 * d_model] = wqkv
    slab[_R_WO:_R_WO + d_model, :d_model] = np.asarray(p["wo"])
    slab[_R_W1:_R_W1 + d_model, :d_ff] = np.asarray(p["w1"])
    slab[_R_W2:_R_W2 + d_ff, :d_model] = np.asarray(p["w2"])

    def put(row, v):
        v = np.asarray(v, np.float32).reshape(-1)
        slab[_R_VEC + row, :v.shape[0]] = v

    put(_V_BQKV, np.concatenate([np.asarray(p["bq"]).reshape(-1),
                                 np.asarray(p["bk"]).reshape(-1),
                                 np.asarray(p["bv"]).reshape(-1)]))
    put(_V_BO, p["bo"])
    put(_V_B1, p["b1"])
    put(_V_B2, p["b2"])
    put(_V_G1, p["g1"])
    put(_V_BETA1, p["beta1"])
    put(_V_G2, p["g2"])
    put(_V_BETA2, p["beta2"])
    # TODO(synk): at production widths cast the matmul weights to bf16
    #             (3x MXU throughput on v6e/v7x); kept f32 here for 1e-4 parity.
    return jnp.asarray(slab)


# ------------------------------ wrapper ---------------------------------------
def transformer_block(x, slab):
    """x: (B, S, D) float32.  slab: output of pack_params()."""
    b, s, d = x.shape
    x2 = x.reshape(b * s, d)

    kernel = functools.partial(
        _transformer_block_kernel,
        batch=b, seq=s, num_heads=NUM_HEADS, d_k=d // NUM_HEADS, d_ff=D_FF)

    # TODO(synk): at production row counts add a row-parallel grid axis
    #             ("parallel") so v7x's 2 TensorCores split the work, and tile
    #             the FFN over d_ff with a VMEM accumulator + explicit
    #             vmem_limit_bytes before scaling D/d_ff up (64 MiB on v7x).
    out = pl.pallas_call(
        kernel,
        out_shape=jax.ShapeDtypeStruct((b * s, d), jnp.float32),
        grid_spec=pltpu.PrefetchScalarGridSpec(
            num_scalar_prefetch=0,
            grid=(1,),                                       # single fused step
            in_specs=[
                pl.BlockSpec((b * s, d), lambda i: (0, 0)),  # activations
                pl.BlockSpec((SLAB_ROWS, SLAB_LANES), lambda i: (0, 0)),  # slab
            ],
            out_specs=pl.BlockSpec((b * s, d), lambda i: (0, 0)),
        ),
        compiler_params=pltpu.CompilerParams(
            dimension_semantics=("arbitrary",)),
    )(x2, slab)
    return out.reshape(b, s, d)


# --------------------------- pure-JAX reference --------------------------------
def reference(x, p):
    def ln(h, g, beta):
        mu = jnp.mean(h, axis=-1, keepdims=True)
        var = jnp.mean(jnp.square(h - mu), axis=-1, keepdims=True)
        return (h - mu) / jnp.sqrt(var + LN_EPS) * g[0] + beta[0]

    bsz, s, d = x.shape
    q = x @ p["wq"] + p["bq"][0]
    k = x @ p["wk"] + p["bk"][0]
    v = x @ p["wv"] + p["bv"][0]
    q = q.reshape(bsz, s, NUM_HEADS, D_K).transpose(0, 2, 1, 3)
    k = k.reshape(bsz, s, NUM_HEADS, D_K).transpose(0, 2, 1, 3)
    v = v.reshape(bsz, s, NUM_HEADS, D_K).transpose(0, 2, 1, 3)
    scores = jnp.einsum("bhqd,bhkd->bhqk", q, k) / math.sqrt(D_K)
    probs = jax.nn.softmax(scores, axis=-1)
    attn = jnp.einsum("bhqk,bhkd->bhqd", probs, v)
    attn = attn.transpose(0, 2, 1, 3).reshape(bsz, s, d)
    attn = attn @ p["wo"] + p["bo"][0]
    x1 = ln(x + attn, p["g1"], p["beta1"])
    ff = jnp.maximum(x1 @ p["w1"] + p["b1"][0], 0.0) @ p["w2"] + p["b2"][0]
    return ln(x1 + ff, p["g2"], p["beta2"])


# --------------------------------- main ----------------------------------------
if __name__ == "__main__":
    key = jax.random.PRNGKey(0)
    keys = jax.random.split(key, 16)

    def lin(kk, fan_in, fan_out):
        bound = 1.0 / math.sqrt(fan_in)
        w = jax.random.uniform(kk, (fan_in, fan_out), jnp.float32, -bound, bound)
        kb = jax.random.fold_in(kk, 1)
        bvec = jax.random.uniform(kb, (1, fan_out), jnp.float32, -bound, bound)
        return w, bvec

    wq, bq = lin(keys[0], D_MODEL, D_MODEL)
    wk, bk = lin(keys[1], D_MODEL, D_MODEL)
    wv, bv = lin(keys[2], D_MODEL, D_MODEL)
    wo, bo = lin(keys[3], D_MODEL, D_MODEL)
    w1, b1 = lin(keys[4], D_MODEL, D_FF)
    w2, b2 = lin(keys[5], D_FF, D_MODEL)

    params = dict(
        wq=wq, bq=bq, wk=wk, bk=bk, wv=wv, bv=bv, wo=wo, bo=bo,
        g1=jnp.ones((1, D_MODEL), jnp.float32),
        beta1=jnp.zeros((1, D_MODEL), jnp.float32),
        w1=w1, b1=b1, w2=w2, b2=b2,
        g2=jnp.ones((1, D_MODEL), jnp.float32),
        beta2=jnp.zeros((1, D_MODEL), jnp.float32),
    )
    slab = pack_params(params)          # one-time packing outside the hot path

    x = jax.random.normal(keys[6], (B, S, D_MODEL), jnp.float32)

    out = transformer_block(x, slab)
    jax.block_until_ready(out)

    ref = reference(x, params)
    np.testing.assert_allclose(np.asarray(out), np.asarray(ref),
                               rtol=1e-4, atol=1e-4)
    print("KERNEL_OK")
</pallas_src>

<mosaic_0001>
module attributes {stable_mosaic.version = 11 : i64} {
  func.func @_transformer_block_kernel(%arg0: i32, %arg1: memref<16x32xf32, #tpu.memory_space<vmem>>, %arg2: memref<168x128xf32, #tpu.memory_space<vmem>>, %arg3: memref<16x32xf32, #tpu.memory_space<vmem>>) attributes {dimension_semantics = [#tpu.dimension_semantics<arbitrary>], iteration_bounds = array<i64: 1>, scalar_prefetch = 0 : i64, scratch_operands = 0 : i64, tpu.core_type = #tpu.core_type<tc>, window_params = [{pipeline_mode = #tpu.pipeline_mode<synchronous>, transform_indices = @transform_0, window_bounds = array<i64: 16, 32>}, {pipeline_mode = #tpu.pipeline_mode<synchronous>, transform_indices = @transform_1, window_bounds = array<i64: 168, 128>}, {pipeline_mode = #tpu.pipeline_mode<synchronous>, transform_indices = @transform_2, window_bounds = array<i64: 16, 32>}]} {
    %c0 = arith.constant 0 : index
    %c0_0 = arith.constant 0 : index
    %0 = vector.load %arg1[%c0, %c0_0] : memref<16x32xf32, #tpu.memory_space<vmem>>, vector<16x32xf32>
    %c0_1 = arith.constant 0 : index
    %c0_2 = arith.constant 0 : index
    %1 = vector.load %arg2[%c0_1, %c0_2] : memref<168x128xf32, #tpu.memory_space<vmem>>, vector<32x96xf32>
    %c32 = arith.constant 32 : index
    %c0_3 = arith.constant 0 : index
    %2 = vector.load %arg2[%c32, %c0_3] : memref<168x128xf32, #tpu.memory_space<vmem>>, vector<32x32xf32>
    %c64 = arith.constant 64 : index
    %c0_4 = arith.constant 0 : index
    %3 = vector.load %arg2[%c64, %c0_4] : memref<168x128xf32, #tpu.memory_space<vmem>>, vector<32x64xf32>
    %c96 = arith.constant 96 : index
    %c0_5 = arith.constant 0 : index
    %4 = vector.load %arg2[%c96, %c0_5] : memref<168x128xf32, #tpu.memory_space<vmem>>, vector<64x32xf32>
    %c160 = arith.constant 160 : index
    %c0_6 = arith.constant 0 : index
    %5 = vector.load %arg2[%c160, %c0_6] : memref<168x128xf32, #tpu.memory_space<vmem>>, vector<8x128xf32>
    %6 = vector.extract_strided_slice %5 {offsets = [0, 0], sizes = [1, 96], strides = [1, 1]} : vector<8x128xf32> to vector<1x96xf32>
    %7 = vector.extract_strided_slice %5 {offsets = [1, 0], sizes = [1, 32], strides = [1, 1]} : vector<8x128xf32> to vector<1x32xf32>
    %8 = vector.extract_strided_slice %5 {offsets = [2, 0], sizes = [1, 64], strides = [1, 1]} : vector<8x128xf32> to vector<1x64xf32>
    %9 = vector.extract_strided_slice %5 {offsets = [3, 0], sizes = [1, 32], strides = [1, 1]} : vector<8x128xf32> to vector<1x32xf32>
    %10 = vector.extract_strided_slice %5 {offsets = [4, 0], sizes = [1, 32], strides = [1, 1]} : vector<8x128xf32> to vector<1x32xf32>
    %11 = vector.extract_strided_slice %5 {offsets = [5, 0], sizes = [1, 32], strides = [1, 1]} : vector<8x128xf32> to vector<1x32xf32>
    %12 = vector.extract_strided_slice %5 {offsets = [6, 0], sizes = [1, 32], strides = [1, 1]} : vector<8x128xf32> to vector<1x32xf32>
    %13 = vector.extract_strided_slice %5 {offsets = [7, 0], sizes = [1, 32], strides = [1, 1]} : vector<8x128xf32> to vector<1x32xf32>
    %cst = arith.constant dense<0.000000e+00> : vector<16x96xf32>
    %14 = tpu.matmul %0, %1, %cst {dimension_numbers = #tpu.dot_dimension_numbers<[1], [0], [0], [1], [0, 0, 1, 1], [], []>} : vector<16x32xf32>, vector<32x96xf32>, vector<16x96xf32> -> vector<16x96xf32>
    %15 = vector.broadcast %6 : vector<1x96xf32> to vector<16x96xf32>
    %16 = arith.addf %14, %15 : vector<16x96xf32>
    %17 = vector.extract_strided_slice %16 {offsets = [0, 0], sizes = [16, 32], strides = [1, 1]} : vector<16x96xf32> to vector<16x32xf32>
    %cst_7 = arith.constant 0.353553385 : f32
    %18 = vector.broadcast %cst_7 : f32 to vector<16x32xf32>
    %19 = arith.mulf %17, %18 : vector<16x32xf32>
    %20 = vector.extract_strided_slice %16 {offsets = [0, 32], sizes = [16, 32], strides = [1, 1]} : vector<16x96xf32> to vector<16x32xf32>
    %21 = vector.extract_strided_slice %16 {offsets = [0, 64], sizes = [16, 32], strides = [1, 1]} : vector<16x96xf32> to vector<16x32xf32>
    %22 = vector.shape_cast %19 : vector<16x32xf32> to vector<2x8x32xf32>
    %23 = vector.shape_cast %20 : vector<16x32xf32> to vector<2x8x32xf32>
    %24 = vector.shape_cast %21 : vector<16x32xf32> to vector<2x8x32xf32>
    %25 = vector.extract_strided_slice %22 {offsets = [0, 0, 0], sizes = [2, 8, 8], strides = [1, 1, 1]} : vector<2x8x32xf32> to vector<2x8x8xf32>
    %26 = vector.extract_strided_slice %23 {offsets = [0, 0, 0], sizes = [2, 8, 8], strides = [1, 1, 1]} : vector<2x8x32xf32> to vector<2x8x8xf32>
    %27 = vector.extract_strided_slice %24 {offsets = [0, 0, 0], sizes = [2, 8, 8], strides = [1, 1, 1]} : vector<2x8x32xf32> to vector<2x8x8xf32>
    "tpu.trace_start"() <{level = 10 : i32, message = "bqd,bkd->bqk"}> : () -> ()
    %cst_8 = arith.constant dense<0.000000e+00> : vector<2x8x8xf32>
    %28 = tpu.matmul %25, %26, %cst_8 {dimension_numbers = #tpu.dot_dimension_numbers<[2], [2], [1], [1], [0, 0, 0, 1, 1, 1], [0], [0]>} : vector<2x8x8xf32>, vector<2x8x8xf32>, vector<2x8x8xf32> -> vector<2x8x8xf32>
    "tpu.trace_stop"() : () -> ()
    %cst_9 = arith.constant dense<0xFF800000> : vector<2x8xf32>
    %29 = vector.multi_reduction <maximumf>, %28, %cst_9 [2] : vector<2x8x8xf32> to vector<2x8xf32>
    %30 = vector.shape_cast %29 : vector<2x8xf32> to vector<2x8x1xf32>
    %31 = vector.broadcast %30 : vector<2x8x1xf32> to vector<2x8x8xf32>
    %32 = arith.subf %28, %31 : vector<2x8x8xf32>
    %33 = math.exp %32 : vector<2x8x8xf32>
    %cst_10 = arith.constant dense<0.000000e+00> : vector<2x8xf32>
    %34 = vector.multi_reduction <add>, %33, %cst_10 [2] : vector<2x8x8xf32> to vector<2x8xf32>
    %35 = vector.shape_cast %34 : vector<2x8xf32> to vector<2x8x1xf32>
    %36 = tpu.reciprocal %35 : vector<2x8x1xf32> -> vector<2x8x1xf32>
    %37 = vector.broadcast %36 : vector<2x8x1xf32> to vector<2x8x8xf32>
    %38 = arith.mulf %33, %37 : vector<2x8x8xf32>
    "tpu.trace_start"() <{level = 10 : i32, message = "bqk,bkd->bqd"}> : () -> ()
    %cst_11 = arith.constant dense<0.000000e+00> : vector<2x8x8xf32>
    %39 = tpu.matmul %38, %27, %cst_11 {dimension_numbers = #tpu.dot_dimension_numbers<[2], [1], [1], [2], [0, 0, 0, 1, 1, 2], [0], [0]>} : vector<2x8x8xf32>, vector<2x8x8xf32>, vector<2x8x8xf32> -> vector<2x8x8xf32>
    "tpu.trace_stop"() : () -> ()
    %40 = vector.shape_cast %39 : vector<2x8x8xf32> to vector<16x8xf32>
    %41 = vector.extract_strided_slice %22 {offsets = [0, 0, 8], sizes = [2, 8, 8], strides = [1, 1, 1]} : vector<2x8x32xf32> to vector<2x8x8xf32>
    %42 = vector.extract_strided_slice %23 {offsets = [0, 0, 8], sizes = [2, 8, 8], strides = [1, 1, 1]} : vector<2x8x32xf32> to vector<2x8x8xf32>
    %43 = vector.extract_strided_slice %24 {offsets = [0, 0, 8], sizes = [2, 8, 8], strides = [1, 1, 1]} : vector<2x8x32xf32> to vector<2x8x8xf32>
    "tpu.trace_start"() <{level = 10 : i32, message = "bqd,bkd->bqk"}> : () -> ()
    %cst_12 = arith.constant dense<0.000000e+00> : vector<2x8x8xf32>
    %44 = tpu.matmul %41, %42, %cst_12 {dimension_numbers = #tpu.dot_dimension_numbers<[2], [2], [1], [1], [0, 0, 0, 1, 1, 1], [0], [0]>} : vector<2x8x8xf32>, vector<2x8x8xf32>, vector<2x8x8xf32> -> vector<2x8x8xf32>
    "tpu.trace_stop"() : () -> ()
    %cst_13 = arith.constant dense<0xFF800000> : vector<2x8xf32>
    %45 = vector.multi_reduction <maximumf>, %44, %cst_13 [2] : vector<2x8x8xf32> to vector<2x8xf32>
    %46 = vector.shape_cast %45 : vector<2x8xf32> to vector<2x8x1xf32>
    %47 = vector.broadcast %46 : vector<2x8x1xf32> to vector<2x8x8xf32>
    %48 = arith.subf %44, %47 : vector<2x8x8xf32>
    %49 = math.exp %48 : vector<2x8x8xf32>
    %cst_14 = arith.constant dense<0.000000e+00> : vector<2x8xf32>
    %50 = vector.multi_reduction <add>, %49, %cst_14 [2] : vector<2x8x8xf32> to vector<2x8xf32>
    %51 = vector.shape_cast %50 : vector<2x8xf32> to vector<2x8x1xf32>
    %52 = tpu.reciprocal %51 : vector<2x8x1xf32> -> vector<2x8x1xf32>
    %53 = vector.broadcast %52 : vector<2x8x1xf32> to vector<2x8x8xf32>
    %54 = arith.mulf %49, %53 : vector<2x8x8xf32>
    "tpu.trace_start"() <{level = 10 : i32, message = "bqk,bkd->bqd"}> : () -> ()
    %cst_15 = arith.constant dense<0.000000e+00> : vector<2x8x8xf32>
    %55 = tpu.matmul %54, %43, %cst_15 {dimension_numbers = #tpu.dot_dimension_numbers<[2], [1], [1], [2], [0, 0, 0, 1, 1, 2], [0], [0]>} : vector<2x8x8xf32>, vector<2x8x8xf32>, vector<2x8x8xf32> -> vector<2x8x8xf32>
    "tpu.trace_stop"() : () -> ()
    %56 = vector.shape_cast %55 : vector<2x8x8xf32> to vector<16x8xf32>
    %57 = vector.extract_strided_slice %22 {offsets = [0, 0, 16], sizes = [2, 8, 8], strides = [1, 1, 1]} : vector<2x8x32xf32> to vector<2x8x8xf32>
    %58 = vector.extract_strided_slice %23 {offsets = [0, 0, 16], sizes = [2, 8, 8], strides = [1, 1, 1]} : vector<2x8x32xf32> to vector<2x8x8xf32>
    %59 = vector.extract_strided_slice %24 {offsets = [0, 0, 16], sizes = [2, 8, 8], strides = [1, 1, 1]} : vector<2x8x32xf32> to vector<2x8x8xf32>
    "tpu.trace_start"() <{level = 10 : i32, message = "bqd,bkd->bqk"}> : () -> ()
    %cst_16 = arith.constant dense<0.000000e+00> : vector<2x8x8xf32>
    %60 = tpu.matmul %57, %58, %cst_16 {dimension_numbers = #tpu.dot_dimension_numbers<[2], [2], [1], [1], [0, 0, 0, 1, 1, 1], [0], [0]>} : vector<2x8x8xf32>, vector<2x8x8xf32>, vector<2x8x8xf32> -> vector<2x8x8xf32>
    "tpu.trace_stop"() : () -> ()
    %cst_17 = arith.constant dense<0xFF800000> : vector<2x8xf32>
    %61 = vector.multi_reduction <maximumf>, %60, %cst_17 [2] : vector<2x8x8xf32> to vector<2x8xf32>
    %62 = vector.shape_cast %61 : vector<2x8xf32> to vector<2x8x1xf32>
    %63 = vector.broadcast %62 : vector<2x8x1xf32> to vector<2x8x8xf32>
    %64 = arith.subf %60, %63 : vector<2x8x8xf32>
    %65 = math.exp %64 : vector<2x8x8xf32>
    %cst_18 = arith.constant dense<0.000000e+00> : vector<2x8xf32>
    %66 = vector.multi_reduction <add>, %65, %cst_18 [2] : vector<2x8x8xf32> to vector<2x8xf32>
    %67 = vector.shape_cast %66 : vector<2x8xf32> to vector<2x8x1xf32>
    %68 = tpu.reciprocal %67 : vector<2x8x1xf32> -> vector<2x8x1xf32>
    %69 = vector.broadcast %68 : vector<2x8x1xf32> to vector<2x8x8xf32>
    %70 = arith.mulf %65, %69 : vector<2x8x8xf32>
    "tpu.trace_start"() <{level = 10 : i32, message = "bqk,bkd->bqd"}> : () -> ()
    %cst_19 = arith.constant dense<0.000000e+00> : vector<2x8x8xf32>
    %71 = tpu.matmul %70, %59, %cst_19 {dimension_numbers = #tpu.dot_dimension_numbers<[2], [1], [1], [2], [0, 0, 0, 1, 1, 2], [0], [0]>} : vector<2x8x8xf32>, vector<2x8x8xf32>, vector<2x8x8xf32> -> vector<2x8x8xf32>
    "tpu.trace_stop"() : () -> ()
    %72 = vector.shape_cast %71 : vector<2x8x8xf32> to vector<16x8xf32>
    %73 = vector.extract_strided_slice %22 {offsets = [0, 0, 24], sizes = [2, 8, 8], strides = [1, 1, 1]} : vector<2x8x32xf32> to vector<2x8x8xf32>
    %74 = vector.extract_strided_slice %23 {offsets = [0, 0, 24], sizes = [2, 8, 8], strides = [1, 1, 1]} : vector<2x8x32xf32> to vector<2x8x8xf32>
    %75 = vector.extract_strided_slice %24 {offsets = [0, 0, 24], sizes = [2, 8, 8], strides = [1, 1, 1]} : vector<2x8x32xf32> to vector<2x8x8xf32>
    "tpu.trace_start"() <{level = 10 : i32, message = "bqd,bkd->bqk"}> : () -> ()
    %cst_20 = arith.constant dense<0.000000e+00> : vector<2x8x8xf32>
    %76 = tpu.matmul %73, %74, %cst_20 {dimension_numbers = #tpu.dot_dimension_numbers<[2], [2], [1], [1], [0, 0, 0, 1, 1, 1], [0], [0]>} : vector<2x8x8xf32>, vector<2x8x8xf32>, vector<2x8x8xf32> -> vector<2x8x8xf32>
    "tpu.trace_stop"() : () -> ()
    %cst_21 = arith.constant dense<0xFF800000> : vector<2x8xf32>
    %77 = vector.multi_reduction <maximumf>, %76, %cst_21 [2] : vector<2x8x8xf32> to vector<2x8xf32>
    %78 = vector.shape_cast %77 : vector<2x8xf32> to vector<2x8x1xf32>
    %79 = vector.broadcast %78 : vector<2x8x1xf32> to vector<2x8x8xf32>
    %80 = arith.subf %76, %79 : vector<2x8x8xf32>
    %81 = math.exp %80 : vector<2x8x8xf32>
    %cst_22 = arith.constant dense<0.000000e+00> : vector<2x8xf32>
    %82 = vector.multi_reduction <add>, %81, %cst_22 [2] : vector<2x8x8xf32> to vector<2x8xf32>
    %83 = vector.shape_cast %82 : vector<2x8xf32> to vector<2x8x1xf32>
    %84 = tpu.reciprocal %83 : vector<2x8x1xf32> -> vector<2x8x1xf32>
    %85 = vector.broadcast %84 : vector<2x8x1xf32> to vector<2x8x8xf32>
    %86 = arith.mulf %81, %85 : vector<2x8x8xf32>
    "tpu.trace_start"() <{level = 10 : i32, message = "bqk,bkd->bqd"}> : () -> ()
    %cst_23 = arith.constant dense<0.000000e+00> : vector<2x8x8xf32>
    %87 = tpu.matmul %86, %75, %cst_23 {dimension_numbers = #tpu.dot_dimension_numbers<[2], [1], [1], [2], [0, 0, 0, 1, 1, 2], [0], [0]>} : vector<2x8x8xf32>, vector<2x8x8xf32>, vector<2x8x8xf32> -> vector<2x8x8xf32>
    "tpu.trace_stop"() : () -> ()
    %88 = vector.shape_cast %87 : vector<2x8x8xf32> to vector<16x8xf32>
    %89 = tpu.concatenate %40, %56, %72, %88 in 1 : vector<16x8xf32>, vector<16x8xf32>, vector<16x8xf32>, vector<16x8xf32> -> vector<16x32xf32>
    %cst_24 = arith.constant dense<0.000000e+00> : vector<16x32xf32>
    %90 = tpu.matmul %89, %2, %cst_24 {dimension_numbers = #tpu.dot_dimension_numbers<[1], [0], [0], [1], [0, 0, 1, 1], [], []>} : vector<16x32xf32>, vector<32x32xf32>, vector<16x32xf32> -> vector<16x32xf32>
    %91 = vector.broadcast %7 : vector<1x32xf32> to vector<16x32xf32>
    %92 = arith.addf %90, %91 : vector<16x32xf32>
    %93 = arith.addf %0, %92 : vector<16x32xf32>
    %cst_25 = arith.constant dense<0.000000e+00> : vector<16xf32>
    %94 = vector.multi_reduction <add>, %93, %cst_25 [1] : vector<16x32xf32> to vector<16xf32>
    %95 = vector.shape_cast %94 : vector<16xf32> to vector<16x1xf32>
    %cst_26 = arith.constant 3.200000e+01 : f32
    %96 = vector.broadcast %cst_26 : f32 to vector<16x1xf32>
    %97 = arith.divf %95, %96 : vector<16x1xf32>
    %98 = vector.broadcast %97 : vector<16x1xf32> to vector<16x32xf32>
    %99 = arith.subf %93, %98 : vector<16x32xf32>
    %100 = arith.mulf %99, %99 : vector<16x32xf32>
    %cst_27 = arith.constant dense<0.000000e+00> : vector<16xf32>
    %101 = vector.multi_reduction <add>, %100, %cst_27 [1] : vector<16x32xf32> to vector<16xf32>
    %102 = vector.shape_cast %101 : vector<16xf32> to vector<16x1xf32>
    %cst_28 = arith.constant 3.200000e+01 : f32
    %103 = vector.broadcast %cst_28 : f32 to vector<16x1xf32>
    %104 = arith.divf %102, %103 : vector<16x1xf32>
    %105 = vector.broadcast %97 : vector<16x1xf32> to vector<16x32xf32>
    %106 = arith.subf %93, %105 : vector<16x32xf32>
    %cst_29 = arith.constant 9.99999974E-6 : f32
    %107 = vector.broadcast %cst_29 : f32 to vector<16x1xf32>
    %108 = arith.addf %104, %107 : vector<16x1xf32>
    %109 = math.rsqrt %108 : vector<16x1xf32>
    %110 = vector.broadcast %109 : vector<16x1xf32> to vector<16x32xf32>
    %111 = arith.mulf %106, %110 : vector<16x32xf32>
    %112 = vector.broadcast %10 : vector<1x32xf32> to vector<16x32xf32>
    %113 = arith.mulf %111, %112 : vector<16x32xf32>
    %114 = vector.broadcast %11 : vector<1x32xf32> to vector<16x32xf32>
    %115 = arith.addf %113, %114 : vector<16x32xf32>
    %cst_30 = arith.constant dense<0.000000e+00> : vector<16x64xf32>
    %116 = tpu.matmul %115, %3, %cst_30 {dimension_numbers = #tpu.dot_dimension_numbers<[1], [0], [0], [1], [0, 0, 1, 1], [], []>} : vector<16x32xf32>, vector<32x64xf32>, vector<16x64xf32> -> vector<16x64xf32>
    %117 = vector.broadcast %8 : vector<1x64xf32> to vector<16x64xf32>
    %118 = arith.addf %116, %117 : vector<16x64xf32>
    %cst_31 = arith.constant 0.000000e+00 : f32
    %119 = vector.broadcast %cst_31 : f32 to vector<16x64xf32>
    %120 = arith.maximumf %118, %119 : vector<16x64xf32>
    %cst_32 = arith.constant dense<0.000000e+00> : vector<16x32xf32>
    %121 = tpu.matmul %120, %4, %cst_32 {dimension_numbers = #tpu.dot_dimension_numbers<[1], [0], [0], [1], [0, 0, 1, 1], [], []>} : vector<16x64xf32>, vector<64x32xf32>, vector<16x32xf32> -> vector<16x32xf32>
    %122 = vector.broadcast %9 : vector<1x32xf32> to vector<16x32xf32>
    %123 = arith.addf %121, %122 : vector<16x32xf32>
    %124 = arith.addf %115, %123 : vector<16x32xf32>
    %cst_33 = arith.constant dense<0.000000e+00> : vector<16xf32>
    %125 = vector.multi_reduction <add>, %124, %cst_33 [1] : vector<16x32xf32> to vector<16xf32>
    %126 = vector.shape_cast %125 : vector<16xf32> to vector<16x1xf32>
    %cst_34 = arith.constant 3.200000e+01 : f32
    %127 = vector.broadcast %cst_34 : f32 to vector<16x1xf32>
    %128 = arith.divf %126, %127 : vector<16x1xf32>
    %129 = vector.broadcast %128 : vector<16x1xf32> to vector<16x32xf32>
    %130 = arith.subf %124, %129 : vector<16x32xf32>
    %131 = arith.mulf %130, %130 : vector<16x32xf32>
    %cst_35 = arith.constant dense<0.000000e+00> : vector<16xf32>
    %132 = vector.multi_reduction <add>, %131, %cst_35 [1] : vector<16x32xf32> to vector<16xf32>
    %133 = vector.shape_cast %132 : vector<16xf32> to vector<16x1xf32>
    %cst_36 = arith.constant 3.200000e+01 : f32
    %134 = vector.broadcast %cst_36 : f32 to vector<16x1xf32>
    %135 = arith.divf %133, %134 : vector<16x1xf32>
    %136 = vector.broadcast %128 : vector<16x1xf32> to vector<16x32xf32>
    %137 = arith.subf %124, %136 : vector<16x32xf32>
    %cst_37 = arith.constant 9.99999974E-6 : f32
    %138 = vector.broadcast %cst_37 : f32 to vector<16x1xf32>
    %139 = arith.addf %135, %138 : vector<16x1xf32>
    %140 = math.rsqrt %139 : vector<16x1xf32>
    %141 = vector.broadcast %140 : vector<16x1xf32> to vector<16x32xf32>
    %142 = arith.mulf %137, %141 : vector<16x32xf32>
    %143 = vector.broadcast %12 : vector<1x32xf32> to vector<16x32xf32>
    %144 = arith.mulf %142, %143 : vector<16x32xf32>
    %145 = vector.broadcast %13 : vector<1x32xf32> to vector<16x32xf32>
    %146 = arith.addf %144, %145 : vector<16x32xf32>
    %c0_38 = arith.constant 0 : index
    %c0_39 = arith.constant 0 : index
    %147 = vector.load %arg3[%c0_38, %c0_39] : memref<16x32xf32, #tpu.memory_space<vmem>>, vector<16x32xf32>
    tpu.vector_store %arg3[%c0_38, %c0_39], %146 {strides = array<i32>} : memref<16x32xf32, #tpu.memory_space<vmem>>, vector<16x32xf32>,
    return
  }
  func.func @transform_0(%arg0: i32) -> (i32, i32) {
    %c0_i32 = arith.constant 0 : i32
    %c0_i32_0 = arith.constant 0 : i32
    %c0_i32_1 = arith.constant 0 : i32
    return %c0_i32, %c0_i32_0 : i32, i32
  }
  func.func @transform_1(%arg0: i32) -> (i32, i32) {
    %c0_i32 = arith.constant 0 : i32
    %c0_i32_0 = arith.constant 0 : i32
    %c0_i32_1 = arith.constant 0 : i32
    return %c0_i32, %c0_i32_0 : i32, i32
  }
  func.func @transform_2(%arg0: i32) -> (i32, i32) {
    %c0_i32 = arith.constant 0 : i32
    %c0_i32_0 = arith.constant 0 : i32
    %c0_i32_1 = arith.constant 0 : i32
    return %c0_i32, %c0_i32_0 : i32, i32
  }
}

</mosaic_0001>

<llo_original>
// kernel: tpu_custom_call.1
$region0: #{tpu_custom_call.1}
  #allocation0 [shape = 'u32[]', space=smem, size = 0x4, offset = 0x4, fixed_abs, tag = 'smem constant byte address 0x4 - core index']
  #allocation1 [shape = 'u32[144,128]{1,0:T(1,128)}', space=vmem, size = 0x12000, scoped, tag = 'internal scratch']
  %s0 = inlined_call_operand.hbm [shape: f32[16,32], index: 0, kind: input, shape index: {}]
  %s1 = inlined_call_operand.hbm [shape: f32[168,128], index: 1, kind: input, shape index: {}]
  %s2 = inlined_call_operand.hbm [shape: f32[16,32], index: 2, kind: output, shape index: {}]
  %s3 = sld [smem:[#allocation0]]
  $region26: #{tpu_custom_call.1} parent=0
    _
  %s5 = ssub.s32 1, %s3
  %s6 = scalar_select 0, %s5, %s3
  $region1: #{tpu_custom_call.1} parent=0
    #allocation2 [shape = 'u8[8192]{0}', space=vmem, size = 0x2000, scoped, tag = 'input window, operand 0, single buffered']
    #allocation3 [shape = 's32[1]{0}', space=sflag, size = 0x4, scoped, tag = 'scoped memory for tpu_custom_call.1']
    #allocation4 [shape = 's32[1]{0}', space=sflag, size = 0x4, scoped, tag = 'scoped memory for tpu_custom_call.1']
    #allocation5 [shape = 'u8[86016]{0}', space=vmem, size = 0x15000, scoped, tag = 'input window, operand 1, single buffered']
    #allocation6 [shape = 's32[1]{0}', space=sflag, size = 0x4, scoped, tag = 'scoped memory for tpu_custom_call.1']
    #allocation7 [shape = 'u8[8192]{0}', space=vmem, size = 0x2000, scoped, tag = 'output window, operand 0, single buffered']
    %7 = vsyncpa [#allocation3], 0
    %8 = vsyncpa [#allocation6], 0
    %9 = vsyncpa [#allocation4], 0
    // Predicated region
    $region2: #{tpu_custom_call.1} parent=1 // pred_check
      _
    $region3: #{tpu_custom_call.1} parent=1 // pred_check_branch
      %11 = sbr.rel (0) target = $region5
    $region4: #{tpu_custom_call.1} parent=1 // pred_region
      %s13 = ssub.s32 256, 256
      %14 = vsyncadd [#allocation3], %s13
      %s15 = sshll.u32 [#allocation2], 4
      %s16 = int_to_ptr.vmem [resolvable:$true] %s15
      %21 = dma.hbm_to_vmem [thread:$0]  %s0, 256, %s16, [#allocation3], 128, 128, 8
    $region5: #{tpu_custom_call.1} parent=1 // pred_fallthru
      _
    // Predicated region
    $region6: #{tpu_custom_call.1} parent=1 // pred_check
      _
    $region7: #{tpu_custom_call.1} parent=1 // pred_check_branch
      %23 = sbr.rel (0) target = $region9
    $region8: #{tpu_custom_call.1} parent=1 // pred_region
      %s25 = ssub.s32 2688, 2688
      %26 = vsyncadd [#allocation6], %s25
      %s27 = sshll.u32 [#allocation5], 4
      %s28 = int_to_ptr.vmem [resolvable:$true] %s27
      %33 = dma.hbm_to_vmem [thread:$0]  %s1, 2688, %s28, [#allocation6], 128, 128, 8
    $region9: #{tpu_custom_call.1} parent=1 // pred_fallthru
      _
    // Predicated region
    $region10: #{tpu_custom_call.1} parent=1 // pred_check
      _
    $region11: #{tpu_custom_call.1} parent=1 // pred_check_branch
      %35 = sbr.rel (0) target = $region13
    $region12: #{tpu_custom_call.1} parent=1 // pred_region
      %36 = dma.done [#allocation3], 256
    $region13: #{tpu_custom_call.1} parent=1 // pred_fallthru
      _
    // Predicated region
    $region14: #{tpu_custom_call.1} parent=1 // pred_check
      _
    $region15: #{tpu_custom_call.1} parent=1 // pred_check_branch
      %38 = sbr.rel (0) target = $region17
    $region16: #{tpu_custom_call.1} parent=1 // pred_region
      %39 = dma.done [#allocation6], 2688
    $region17: #{tpu_custom_call.1} parent=1 // pred_fallthru
      _
    %v40 = vld [vmem:[#allocation2] sm:$0xff]
    %v41 = vld [vmem:[#allocation2 + $0x8] sm:$0xff]
    %v42 = vld [vmem:[#allocation5] sm:$0xff]
    %v43 = vld [vmem:[#allocation5 + $0x8] sm:$0xff]
    %v44 = vld [vmem:[#allocation5 + $0x10] sm:$0xff]
    %v45 = vld [vmem:[#allocation5 + $0x18] sm:$0xff]
    %v46 = vld [vmem:[#allocation5 + $0x20] sm:$0xff]
    %v47 = vld [vmem:[#allocation5 + $0x28] sm:$0xff]
    %v48 = vld [vmem:[#allocation5 + $0x30] sm:$0xff]
    %v49 = vld [vmem:[#allocation5 + $0x38] sm:$0xff]
    %v50 = vld [vmem:[#allocation5 + $0x40] sm:$0xff]
    %v51 = vld [vmem:[#allocation5 + $0x48] sm:$0xff]
    %v52 = vld [vmem:[#allocation5 + $0x50] sm:$0xff]
    %v53 = vld [vmem:[#allocation5 + $0x58] sm:$0xff]
    %v54 = vld [vmem:[#allocation5 + $0x60] sm:$0xff]
    %v55 = vld [vmem:[#allocation5 + $0x68] sm:$0xff]
    %v56 = vld [vmem:[#allocation5 + $0x70] sm:$0xff]
    %v57 = vld [vmem:[#allocation5 + $0x78] sm:$0xff]
    %v58 = vld [vmem:[#allocation5 + $0x80] sm:$0xff]
    %v59 = vld [vmem:[#allocation5 + $0x88] sm:$0xff]
    %v60 = vld [vmem:[#allocation5 + $0x90] sm:$0xff]
    %v61 = vld [vmem:[#allocation5 + $0x98] sm:$0xff]
    %v62 = vld [vmem:[#allocation5 + $0xa0] sm:$0xff]
    %v63 = vlaneseq
    %v64 = vshrl.u32 %v63, 7
    %v65 = vsub.s32 0, %v64
    %v66 = vrot.slane %v62, %v65
    %vm67 = vcmask 261120
    %v69 = vsel %vm67, %v40, 0
    %v72 = vsel %vm67, %v41, 0
    %74 = vmatprep.subr.mxu0 0.0
    %75 = vmatpush1.msra.mxu0 0.0
    %76 = vmatprep.subr.mxu0 0.0
    %77 = vmatpush1.msra.mxu0 0.0
    %78 = vmatprep.subr.mxu0 0.0
    %79 = vmatpush1.msra.mxu0 0.0
    %80 = vmatprep.subr.mxu0 0.0
    %81 = vmatpush1.msra.mxu0 0.0
    %82 = vmatprep.subr.mxu0 0.0
    %83 = vmatpush1.msra.mxu0 0.0
    %84 = vmatprep.subr.mxu0 0.0
    %85 = vmatpush1.msra.mxu0 0.0
    %86 = vmatprep.subr.mxu0 0.0
    %87 = vmatpush1.msra.mxu0 0.0
    %88 = vmatprep.subr.mxu0 0.0
    %89 = vmatpush1.msra.mxu0 0.0
    %90 = vmatprep.subr.mxu0 0.0
    %91 = vmatpush1.msra.mxu0 0.0
    %92 = vmatprep.subr.mxu0 0.0
    %93 = vmatpush1.msra.mxu0 0.0
    %94 = vmatprep.subr.mxu0 0.0
    %95 = vmatpush1.msra.mxu0 0.0
    %96 = vmatprep.subr.mxu0 0.0
    %97 = vmatpush1.msra.mxu0 0.0
    %98 = vmatprep.subr.mxu0 0.0
    %99 = vmatpush1.msra.mxu0 %v45
    %100 = vmatprep.subr.mxu0 0.0
    %101 = vmatpush1.msra.mxu0 %v44
    %102 = vmatprep.subr.mxu0 0.0
    %103 = vmatpush1.msra.mxu0 %v43
    %104 = vmatprep.subr.mxu0 0.0
    %105 = vmatpush1.msra.mxu0 %v42
    %106 = vmatprep.subr.mxu0 0.0
    %107 = vmatpush2.msra.mxu0 0.0
    %108 = vmatprep.subr.mxu0 0.0
    %109 = vmatpush2.msra.mxu0 0.0
    %110 = vmatprep.subr.mxu0 0.0
    %111 = vmatpush2.msra.mxu0 0.0
    %112 = vmatprep.subr.mxu0 0.0
    %113 = vmatpush2.msra.mxu0 0.0
    %114 = vmatprep.subr.mxu0 0.0
    %115 = vmatpush2.msra.mxu0 0.0
    %116 = vmatprep.subr.mxu0 0.0
    %117 = vmatpush2.msra.mxu0 0.0
    %118 = vmatprep.subr.mxu0 0.0
    %119 = vmatpush2.msra.mxu0 0.0
    %120 = vmatprep.subr.mxu0 0.0
    %121 = vmatpush2.msra.mxu0 0.0
    %122 = vmatprep.subr.mxu0 0.0
    %123 = vmatpush2.msra.mxu0 0.0
    %124 = vmatprep.subr.mxu0 0.0
    %125 = vmatpush2.msra.mxu0 0.0
    %126 = vmatprep.subr.mxu0 0.0
    %127 = vmatpush2.msra.mxu0 0.0
    %128 = vmatprep.subr.mxu0 0.0
    %129 = vmatpush2.msra.mxu0 0.0
    %130 = vmatprep.subr.mxu0 0.0
    %131 = vmatpush2.msra.mxu0 0.0
    %132 = vmatprep.subr.mxu0 0.0
    %133 = vmatpush2.msra.mxu0 0.0
    %134 = vmatprep.subr.mxu0 0.0
    %135 = vmatpush2.msra.mxu0 0.0
    %136 = vmatprep.subr.mxu0 0.0
    %137 = vmatpush2.msra.mxu0 0.0
    %138 = vmatprep.mubr.f32.mxu0 0.0
    %139 = vmatmul.mubr.f32.gmra.mxu0 %v69
    %v140 = vpop.f32.mrf.mxu0
    %v141 = vadd.f32 %v66, %v140
    %v142 = vpop.f32.mrf.mxu0
    %143 = vmatprep.mubr.f32.mxu0 0.0
    %144 = vmatmul.mubr.f32.gmra.mxu0 %v72
    %v145 = vpop.f32.mrf.mxu0
    %v146 = vadd.f32 %v66, %v145
    %v147 = vpop.f32.mrf.mxu0
    %148 = vdwg.mxu0
    %v149 = vmul.f32 %v141, 0.35355338
    %v150 = vmul.f32 %v146, 0.35355338
    %152 = vrot.lane.b32.xlu0 %v141, 96
    %v153 = vpop.permute.xlu0 %152
    %vm154 = vcmask 64512
    %v156 = vsel %vm154, %v149, 0
    %v158 = vsel %vm154, %v153, 0
    %160 = vmatprep.subr.mxu0 0.0
    %161 = vmatpush1.xpose.msra.mxu0 0.0
    %162 = vmatprep.subr.mxu0 0.0
    %163 = vmatpush1.xpose.msra.mxu0 0.0
    %164 = vmatprep.subr.mxu0 0.0
    %165 = vmatpush1.xpose.msra.mxu0 0.0
    %166 = vmatprep.subr.mxu0 0.0
    %167 = vmatpush1.xpose.msra.mxu0 0.0
    %168 = vmatprep.subr.mxu0 0.0
    %169 = vmatpush1.xpose.msra.mxu0 0.0
    %170 = vmatprep.subr.mxu0 0.0
    %171 = vmatpush1.xpose.msra.mxu0 0.0
    %172 = vmatprep.subr.mxu0 0.0
    %173 = vmatpush1.xpose.msra.mxu0 0.0
    %174 = vmatprep.subr.mxu0 0.0
    %175 = vmatpush1.xpose.msra.mxu0 0.0
    %176 = vmatprep.subr.mxu0 0.0
    %177 = vmatpush1.xpose.msra.mxu0 0.0
    %178 = vmatprep.subr.mxu0 0.0
    %179 = vmatpush1.xpose.msra.mxu0 0.0
    %180 = vmatprep.subr.mxu0 0.0
    %181 = vmatpush1.xpose.msra.mxu0 0.0
    %182 = vmatprep.subr.mxu0 0.0
    %183 = vmatpush1.xpose.msra.mxu0 0.0
    %184 = vmatprep.subr.mxu0 0.0
    %185 = vmatpush1.xpose.msra.mxu0 0.0
    %186 = vmatprep.subr.mxu0 0.0
    %187 = vmatpush1.xpose.msra.mxu0 0.0
    %188 = vmatprep.subr.mxu0 0.0
    %189 = vmatpush1.xpose.msra.mxu0 0.0
    %190 = vmatprep.subr.mxu0 0.0
    %191 = vmatpush1.xpose.msra.mxu0 %v158
    %192 = vmatprep.subr.mxu0 0.0
    %193 = vmatpush2.xpose.msra.mxu0 0.0
    %194 = vmatprep.subr.mxu0 0.0
    %195 = vmatpush2.xpose.msra.mxu0 0.0
    %196 = vmatprep.subr.mxu0 0.0
    %197 = vmatpush2.xpose.msra.mxu0 0.0
    %198 = vmatprep.subr.mxu0 0.0
    %199 = vmatpush2.xpose.msra.mxu0 0.0
    %200 = vmatprep.subr.mxu0 0.0
    %201 = vmatpush2.xpose.msra.mxu0 0.0
    %202 = vmatprep.subr.mxu0 0.0
    %203 = vmatpush2.xpose.msra.mxu0 0.0
    %204 = vmatprep.subr.mxu0 0.0
    %205 = vmatpush2.xpose.msra.mxu0 0.0
    %206 = vmatprep.subr.mxu0 0.0
    %207 = vmatpush2.xpose.msra.mxu0 0.0
    %208 = vmatprep.subr.mxu0 0.0
    %209 = vmatpush2.xpose.msra.mxu0 0.0
    %210 = vmatprep.subr.mxu0 0.0
    %211 = vmatpush2.xpose.msra.mxu0 0.0
    %212 = vmatprep.subr.mxu0 0.0
    %213 = vmatpush2.xpose.msra.mxu0 0.0
    %214 = vmatprep.subr.mxu0 0.0
    %215 = vmatpush2.xpose.msra.mxu0 0.0
    %216 = vmatprep.subr.mxu0 0.0
    %217 = vmatpush2.xpose.msra.mxu0 0.0
    %218 = vmatprep.subr.mxu0 0.0
    %219 = vmatpush2.xpose.msra.mxu0 0.0
    %220 = vmatprep.subr.mxu0 0.0
    %221 = vmatpush2.xpose.msra.mxu0 0.0
    %222 = vmatprep.subr.mxu0 0.0
    %223 = vmatpush2.xpose.msra.mxu0 0.0
    %224 = vmatprep.mubr.f32.mxu0 0.0
    %225 = vmatmul.mubr.f32.gmra.mxu0 %v156
    %v226 = vpop.f32.mrf.mxu0
    %v227 = vadd.f32 0.0, %v226
    %v228 = vpop.f32.mrf.mxu0
    %229 = vdwg.mxu0
    %231 = vrot.lane.b32.xlu0 %v146, 96
    %v232 = vpop.permute.xlu0 %231
    %v234 = vsel %vm154, %v150, 0
    %v236 = vsel %vm154, %v232, 0
    %238 = vmatprep.subr.mxu0 0.0
    %239 = vmatpush1.xpose.msra.mxu0 0.0
    %240 = vmatprep.subr.mxu0 0.0
    %241 = vmatpush1.xpose.msra.mxu0 0.0
    %242 = vmatprep.subr.mxu0 0.0
    %243 = vmatpush1.xpose.msra.mxu0 0.0
    %244 = vmatprep.subr.mxu0 0.0
    %245 = vmatpush1.xpose.msra.mxu0 0.0
    %246 = vmatprep.subr.mxu0 0.0
    %247 = vmatpush1.xpose.msra.mxu0 0.0
    %248 = vmatprep.subr.mxu0 0.0
    %249 = vmatpush1.xpose.msra.mxu0 0.0
    %250 = vmatprep.subr.mxu0 0.0
    %251 = vmatpush1.xpose.msra.mxu0 0.0
    %252 = vmatprep.subr.mxu0 0.0
    %253 = vmatpush1.xpose.msra.mxu0 0.0
    %254 = vmatprep.subr.mxu0 0.0
    %255 = vmatpush1.xpose.msra.mxu0 0.0
    %256 = vmatprep.subr.mxu0 0.0
    %257 = vmatpush1.xpose.msra.mxu0 0.0
    %258 = vmatprep.subr.mxu0 0.0
    %259 = vmatpush1.xpose.msra.mxu0 0.0
    %260 = vmatprep.subr.mxu0 0.0
    %261 = vmatpush1.xpose.msra.mxu0 0.0
    %262 = vmatprep.subr.mxu0 0.0
    %263 = vmatpush1.xpose.msra.mxu0 0.0
    %264 = vmatprep.subr.mxu0 0.0
    %265 = vmatpush1.xpose.msra.mxu0 0.0
    %266 = vmatprep.subr.mxu0 0.0
    %267 = vmatpush1.xpose.msra.mxu0 0.0
    %268 = vmatprep.subr.mxu0 0.0
    %269 = vmatpush1.xpose.msra.mxu0 %v236
    %270 = vmatprep.subr.mxu0 0.0
    %271 = vmatpush2.xpose.msra.mxu0 0.0
    %272 = vmatprep.subr.mxu0 0.0
    %273 = vmatpush2.xpose.msra.mxu0 0.0
    %274 = vmatprep.subr.mxu0 0.0
    %275 = vmatpush2.xpose.msra.mxu0 0.0
    %276 = vmatprep.subr.mxu0 0.0
    %277 = vmatpush2.xpose.msra.mxu0 0.0
    %278 = vmatprep.subr.mxu0 0.0
    %279 = vmatpush2.xpose.msra.mxu0 0.0
    %280 = vmatprep.subr.mxu0 0.0
    %281 = vmatpush2.xpose.msra.mxu0 0.0
    %282 = vmatprep.subr.mxu0 0.0
    %283 = vmatpush2.xpose.msra.mxu0 0.0
    %284 = vmatprep.subr.mxu0 0.0
    %285 = vmatpush2.xpose.msra.mxu0 0.0
    %286 = vmatprep.subr.mxu0 0.0
    %287 = vmatpush2.xpose.msra.mxu0 0.0
    %288 = vmatprep.subr.mxu0 0.0
    %289 = vmatpush2.xpose.msra.mxu0 0.0
    %290 = vmatprep.subr.mxu0 0.0
    %291 = vmatpush2.xpose.msra.mxu0 0.0
    %292 = vmatprep.subr.mxu0 0.0
    %293 = vmatpush2.xpose.msra.mxu0 0.0
    %294 = vmatprep.subr.mxu0 0.0
    %295 = vmatpush2.xpose.msra.mxu0 0.0
    %296 = vmatprep.subr.mxu0 0.0
    %297 = vmatpush2.xpose.msra.mxu0 0.0
    %298 = vmatprep.subr.mxu0 0.0
    %299 = vmatpush2.xpose.msra.mxu0 0.0
    %300 = vmatprep.subr.mxu0 0.0
    %301 = vmatpush2.xpose.msra.mxu0 0.0
    %302 = vmatprep.mubr.f32.mxu0 0.0
    %303 = vmatmul.mubr.f32.gmra.mxu0 %v234
    %v304 = vpop.f32.mrf.mxu0
    %v305 = vadd.f32 0.0, %v304
    %v306 = vpop.f32.mrf.mxu0
    %307 = vdwg.mxu0
    %v308 = vsel %vm154, %v227, -inf
    %309 = vmax.xlane.f32.xlu0 %v308
    %v310 = vpop.xlane.xlu0 %309
    %v311 = vsel %vm154, %v305, -inf
    %312 = vmax.xlane.f32.xlu0 %v311
    %v313 = vpop.xlane.xlu0 %312
    %v314 = vsub.f32 %v227, %v310
    %v315 = vsub.f32 %v305, %v313
    %v316 = vmul.f32 %v314, 1.442695
    %v317 = vpow.pop %v316
    %v318 = vmul.f32 %v315, 1.442695
    %v319 = vpow.pop %v318
    %v320 = vsel %vm154, %v317, 0.0
    %321 = vadd.xlane.f32.xlu0 %v320
    %v322 = vpop.xlane.xlu0 %321
    %v323 = vsel %vm154, %v319, 0.0
    %324 = vadd.xlane.f32.xlu0 %v323
    %v325 = vpop.xlane.xlu0 %324
    %v326 = vrcp.pop %v322
    %v327 = vrcp.pop %v325
    %v328 = vmul.f32 %v317, %v326
    %v329 = vmul.f32 %v319, %v327
    %330 = vrot.lane.b32.xlu0 %v141, 64
    %v331 = vpop.permute.xlu0 %330
    %v334 = vsel %vm154, %v328, 0
    %336 = vmatprep.subr.mxu0 0.0
    %337 = vmatpush1.msra.mxu0 0.0
    %338 = vmatprep.subr.mxu0 0.0
    %339 = vmatpush1.msra.mxu0 0.0
    %340 = vmatprep.subr.mxu0 0.0
    %341 = vmatpush1.msra.mxu0 0.0
    %342 = vmatprep.subr.mxu0 0.0
    %343 = vmatpush1.msra.mxu0 0.0
    %344 = vmatprep.subr.mxu0 0.0
    %345 = vmatpush1.msra.mxu0 0.0
    %346 = vmatprep.subr.mxu0 0.0
    %347 = vmatpush1.msra.mxu0 0.0
    %348 = vmatprep.subr.mxu0 0.0
    %349 = vmatpush1.msra.mxu0 0.0
    %350 = vmatprep.subr.mxu0 0.0
    %351 = vmatpush1.msra.mxu0 0.0
    %352 = vmatprep.subr.mxu0 0.0
    %353 = vmatpush1.msra.mxu0 0.0
    %354 = vmatprep.subr.mxu0 0.0
    %355 = vmatpush1.msra.mxu0 0.0
    %356 = vmatprep.subr.mxu0 0.0
    %357 = vmatpush1.msra.mxu0 0.0
    %358 = vmatprep.subr.mxu0 0.0
    %359 = vmatpush1.msra.mxu0 0.0
    %360 = vmatprep.subr.mxu0 0.0
    %361 = vmatpush1.msra.mxu0 0.0
    %362 = vmatprep.subr.mxu0 0.0
    %363 = vmatpush1.msra.mxu0 0.0
    %364 = vmatprep.subr.mxu0 0.0
    %365 = vmatpush1.msra.mxu0 0.0
    %366 = vmatprep.subr.mxu0 0.0
    %367 = vmatpush1.msra.mxu0 %v331
    %368 = vmatprep.subr.mxu0 0.0
    %369 = vmatpush2.msra.mxu0 0.0
    %370 = vmatprep.subr.mxu0 0.0
    %371 = vmatpush2.msra.mxu0 0.0
    %372 = vmatprep.subr.mxu0 0.0
    %373 = vmatpush2.msra.mxu0 0.0
    %374 = vmatprep.subr.mxu0 0.0
    %375 = vmatpush2.msra.mxu0 0.0
    %376 = vmatprep.subr.mxu0 0.0
    %377 = vmatpush2.msra.mxu0 0.0
    %378 = vmatprep.subr.mxu0 0.0
    %379 = vmatpush2.msra.mxu0 0.0
    %380 = vmatprep.subr.mxu0 0.0
    %381 = vmatpush2.msra.mxu0 0.0
    %382 = vmatprep.subr.mxu0 0.0
    %383 = vmatpush2.msra.mxu0 0.0
    %384 = vmatprep.subr.mxu0 0.0
    %385 = vmatpush2.msra.mxu0 0.0
    %386 = vmatprep.subr.mxu0 0.0
    %387 = vmatpush2.msra.mxu0 0.0
    %388 = vmatprep.subr.mxu0 0.0
    %389 = vmatpush2.msra.mxu0 0.0
    %390 = vmatprep.subr.mxu0 0.0
    %391 = vmatpush2.msra.mxu0 0.0
    %392 = vmatprep.subr.mxu0 0.0
    %393 = vmatpush2.msra.mxu0 0.0
    %394 = vmatprep.subr.mxu0 0.0
    %395 = vmatpush2.msra.mxu0 0.0
    %396 = vmatprep.subr.mxu0 0.0
    %397 = vmatpush2.msra.mxu0 0.0
    %398 = vmatprep.subr.mxu0 0.0
    %399 = vmatpush2.msra.mxu0 0.0
    %400 = vmatprep.mubr.f32.mxu0 0.0
    %401 = vmatmul.mubr.f32.gmra.mxu0 %v334
    %v402 = vpop.f32.mrf.mxu0
    %v403 = vadd.f32 0.0, %v402
    %v404 = vpop.f32.mrf.mxu0
    %405 = vdwg.mxu0
    %406 = vrot.lane.b32.xlu0 %v146, 64
    %v407 = vpop.permute.xlu0 %406
    %v410 = vsel %vm154, %v329, 0
    %412 = vmatprep.subr.mxu0 0.0
    %413 = vmatpush1.msra.mxu0 0.0
    %414 = vmatprep.subr.mxu0 0.0
    %415 = vmatpush1.msra.mxu0 0.0
    %416 = vmatprep.subr.mxu0 0.0
    %417 = vmatpush1.msra.mxu0 0.0
    %418 = vmatprep.subr.mxu0 0.0
    %419 = vmatpush1.msra.mxu0 0.0
    %420 = vmatprep.subr.mxu0 0.0
    %421 = vmatpush1.msra.mxu0 0.0
    %422 = vmatprep.subr.mxu0 0.0
    %423 = vmatpush1.msra.mxu0 0.0
    %424 = vmatprep.subr.mxu0 0.0
    %425 = vmatpush1.msra.mxu0 0.0
    %426 = vmatprep.subr.mxu0 0.0
    %427 = vmatpush1.msra.mxu0 0.0
    %428 = vmatprep.subr.mxu0 0.0
    %429 = vmatpush1.msra.mxu0 0.0
    %430 = vmatprep.subr.mxu0 0.0
    %431 = vmatpush1.msra.mxu0 0.0
    %432 = vmatprep.subr.mxu0 0.0
    %433 = vmatpush1.msra.mxu0 0.0
    %434 = vmatprep.subr.mxu0 0.0
    %435 = vmatpush1.msra.mxu0 0.0
    %436 = vmatprep.subr.mxu0 0.0
    %437 = vmatpush1.msra.mxu0 0.0
    %438 = vmatprep.subr.mxu0 0.0
    %439 = vmatpush1.msra.mxu0 0.0
    %440 = vmatprep.subr.mxu0 0.0
    %441 = vmatpush1.msra.mxu0 0.0
    %442 = vmatprep.subr.mxu0 0.0
    %443 = vmatpush1.msra.mxu0 %v407
    %444 = vmatprep.subr.mxu0 0.0
    %445 = vmatpush2.msra.mxu0 0.0
    %446 = vmatprep.subr.mxu0 0.0
    %447 = vmatpush2.msra.mxu0 0.0
    %448 = vmatprep.subr.mxu0 0.0
    %449 = vmatpush2.msra.mxu0 0.0
    %450 = vmatprep.subr.mxu0 0.0
    %451 = vmatpush2.msra.mxu0 0.0
    %452 = vmatprep.subr.mxu0 0.0
    %453 = vmatpush2.msra.mxu0 0.0
    %454 = vmatprep.subr.mxu0 0.0
    %455 = vmatpush2.msra.mxu0 0.0
    %456 = vmatprep.subr.mxu0 0.0
    %457 = vmatpush2.msra.mxu0 0.0
    %458 = vmatprep.subr.mxu0 0.0
    %459 = vmatpush2.msra.mxu0 0.0
    %460 = vmatprep.subr.mxu0 0.0
    %461 = vmatpush2.msra.mxu0 0.0
    %462 = vmatprep.subr.mxu0 0.0
    %463 = vmatpush2.msra.mxu0 0.0
    %464 = vmatprep.subr.mxu0 0.0
    %465 = vmatpush2.msra.mxu0 0.0
    %466 = vmatprep.subr.mxu0 0.0
    %467 = vmatpush2.msra.mxu0 0.0
    %468 = vmatprep.subr.mxu0 0.0
    %469 = vmatpush2.msra.mxu0 0.0
    %470 = vmatprep.subr.mxu0 0.0
    %471 = vmatpush2.msra.mxu0 0.0
    %472 = vmatprep.subr.mxu0 0.0
    %473 = vmatpush2.msra.mxu0 0.0
    %474 = vmatprep.subr.mxu0 0.0
    %475 = vmatpush2.msra.mxu0 0.0
    %476 = vmatprep.mubr.f32.mxu0 0.0
    %477 = vmatmul.mubr.f32.gmra.mxu0 %v410
    %v478 = vpop.f32.mrf.mxu0
    %v479 = vadd.f32 0.0, %v478
    %v480 = vpop.f32.mrf.mxu0
    %481 = vdwg.mxu0
    %482 = vrot.lane.b32.xlu0 %v149, 120
    %v483 = vpop.permute.xlu0 %482
    %484 = vrot.lane.b32.xlu0 %v141, 88
    %v485 = vpop.permute.xlu0 %484
    %v486 = vsel %vm154, %v483, 0
    %v488 = vsel %vm154, %v485, 0
    %490 = vmatprep.subr.mxu0 0.0
    %491 = vmatpush1.xpose.msra.mxu0 0.0
    %492 = vmatprep.subr.mxu0 0.0
    %493 = vmatpush1.xpose.msra.mxu0 0.0
    %494 = vmatprep.subr.mxu0 0.0
    %495 = vmatpush1.xpose.msra.mxu0 0.0
    %496 = vmatprep.subr.mxu0 0.0
    %497 = vmatpush1.xpose.msra.mxu0 0.0
    %498 = vmatprep.subr.mxu0 0.0
    %499 = vmatpush1.xpose.msra.mxu0 0.0
    %500 = vmatprep.subr.mxu0 0.0
    %501 = vmatpush1.xpose.msra.mxu0 0.0
    %502 = vmatprep.subr.mxu0 0.0
    %503 = vmatpush1.xpose.msra.mxu0 0.0
    %504 = vmatprep.subr.mxu0 0.0
    %505 = vmatpush1.xpose.msra.mxu0 0.0
    %506 = vmatprep.subr.mxu0 0.0
    %507 = vmatpush1.xpose.msra.mxu0 0.0
    %508 = vmatprep.subr.mxu0 0.0
    %509 = vmatpush1.xpose.msra.mxu0 0.0
    %510 = vmatprep.subr.mxu0 0.0
    %511 = vmatpush1.xpose.msra.mxu0 0.0
    %512 = vmatprep.subr.mxu0 0.0
    %513 = vmatpush1.xpose.msra.mxu0 0.0
    %514 = vmatprep.subr.mxu0 0.0
    %515 = vmatpush1.xpose.msra.mxu0 0.0
    %516 = vmatprep.subr.mxu0 0.0
    %517 = vmatpush1.xpose.msra.mxu0 0.0
    %518 = vmatprep.subr.mxu0 0.0
    %519 = vmatpush1.xpose.msra.mxu0 0.0
    %520 = vmatprep.subr.mxu0 0.0
    %521 = vmatpush1.xpose.msra.mxu0 %v488
    %522 = vmatprep.subr.mxu0 0.0
    %523 = vmatpush2.xpose.msra.mxu0 0.0
    %524 = vmatprep.subr.mxu0 0.0
    %525 = vmatpush2.xpose.msra.mxu0 0.0
    %526 = vmatprep.subr.mxu0 0.0
    %527 = vmatpush2.xpose.msra.mxu0 0.0
    %528 = vmatprep.subr.mxu0 0.0
    %529 = vmatpush2.xpose.msra.mxu0 0.0
    %530 = vmatprep.subr.mxu0 0.0
    %531 = vmatpush2.xpose.msra.mxu0 0.0
    %532 = vmatprep.subr.mxu0 0.0
    %533 = vmatpush2.xpose.msra.mxu0 0.0
    %534 = vmatprep.subr.mxu0 0.0
    %535 = vmatpush2.xpose.msra.mxu0 0.0
    %536 = vmatprep.subr.mxu0 0.0
    %537 = vmatpush2.xpose.msra.mxu0 0.0
    %538 = vmatprep.subr.mxu0 0.0
    %539 = vmatpush2.xpose.msra.mxu0 0.0
    %540 = vmatprep.subr.mxu0 0.0
    %541 = vmatpush2.xpose.msra.mxu0 0.0
    %542 = vmatprep.subr.mxu0 0.0
    %543 = vmatpush2.xpose.msra.mxu0 0.0
    %544 = vmatprep.subr.mxu0 0.0
    %545 = vmatpush2.xpose.msra.mxu0 0.0
    %546 = vmatprep.subr.mxu0 0.0
    %547 = vmatpush2.xpose.msra.mxu0 0.0
    %548 = vmatprep.subr.mxu0 0.0
    %549 = vmatpush2.xpose.msra.mxu0 0.0
    %550 = vmatprep.subr.mxu0 0.0
    %551 = vmatpush2.xpose.msra.mxu0 0.0
    %552 = vmatprep.subr.mxu0 0.0
    %553 = vmatpush2.xpose.msra.mxu0 0.0
    %554 = vmatprep.mubr.f32.mxu0 0.0
    %555 = vmatmul.mubr.f32.gmra.mxu0 %v486
    %v556 = vpop.f32.mrf.mxu0
    %v557 = vadd.f32 0.0, %v556
    %v558 = vpop.f32.mrf.mxu0
    %559 = vdwg.mxu0
    %560 = vrot.lane.b32.xlu0 %v150, 120
    %v561 = vpop.permute.xlu0 %560
    %562 = vrot.lane.b32.xlu0 %v146, 88
    %v563 = vpop.permute.xlu0 %562
    %v564 = vsel %vm154, %v561, 0
    %v566 = vsel %vm154, %v563, 0
    %568 = vmatprep.subr.mxu0 0.0
    %569 = vmatpush1.xpose.msra.mxu0 0.0
    %570 = vmatprep.subr.mxu0 0.0
    %571 = vmatpush1.xpose.msra.mxu0 0.0
    %572 = vmatprep.subr.mxu0 0.0
    %573 = vmatpush1.xpose.msra.mxu0 0.0
    %574 = vmatprep.subr.mxu0 0.0
    %575 = vmatpush1.xpose.msra.mxu0 0.0
    %576 = vmatprep.subr.mxu0 0.0
    %577 = vmatpush1.xpose.msra.mxu0 0.0
    %578 = vmatprep.subr.mxu0 0.0
    %579 = vmatpush1.xpose.msra.mxu0 0.0
    %580 = vmatprep.subr.mxu0 0.0
    %581 = vmatpush1.xpose.msra.mxu0 0.0
    %582 = vmatprep.subr.mxu0 0.0
    %583 = vmatpush1.xpose.msra.mxu0 0.0
    %584 = vmatprep.subr.mxu0 0.0
    %585 = vmatpush1.xpose.msra.mxu0 0.0
    %586 = vmatprep.subr.mxu0 0.0
    %587 = vmatpush1.xpose.msra.mxu0 0.0
    %588 = vmatprep.subr.mxu0 0.0
    %589 = vmatpush1.xpose.msra.mxu0 0.0
    %590 = vmatprep.subr.mxu0 0.0
    %591 = vmatpush1.xpose.msra.mxu0 0.0
    %592 = vmatprep.subr.mxu0 0.0
    %593 = vmatpush1.xpose.msra.mxu0 0.0
    %594 = vmatprep.subr.mxu0 0.0
    %595 = vmatpush1.xpose.msra.mxu0 0.0
    %596 = vmatprep.subr.mxu0 0.0
    %597 = vmatpush1.xpose.msra.mxu0 0.0
    %598 = vmatprep.subr.mxu0 0.0
    %599 = vmatpush1.xpose.msra.mxu0 %v566
    %600 = vmatprep.subr.mxu0 0.0
    %601 = vmatpush2.xpose.msra.mxu0 0.0
    %602 = vmatprep.subr.mxu0 0.0
    %603 = vmatpush2.xpose.msra.mxu0 0.0
    %604 = vmatprep.subr.mxu0 0.0
    %605 = vmatpush2.xpose.msra.mxu0 0.0
    %606 = vmatprep.subr.mxu0 0.0
    %607 = vmatpush2.xpose.msra.mxu0 0.0
    %608 = vmatprep.subr.mxu0 0.0
    %609 = vmatpush2.xpose.msra.mxu0 0.0
    %610 = vmatprep.subr.mxu0 0.0
    %611 = vmatpush2.xpose.msra.mxu0 0.0
    %612 = vmatprep.subr.mxu0 0.0
    %613 = vmatpush2.xpose.msra.mxu0 0.0
    %614 = vmatprep.subr.mxu0 0.0
    %615 = vmatpush2.xpose.msra.mxu0 0.0
    %616 = vmatprep.subr.mxu0 0.0
    %617 = vmatpush2.xpose.msra.mxu0 0.0
    %618 = vmatprep.subr.mxu0 0.0
    %619 = vmatpush2.xpose.msra.mxu0 0.0
    %620 = vmatprep.subr.mxu0 0.0
    %621 = vmatpush2.xpose.msra.mxu0 0.0
    %622 = vmatprep.subr.mxu0 0.0
    %623 = vmatpush2.xpose.msra.mxu0 0.0
    %624 = vmatprep.subr.mxu0 0.0
    %625 = vmatpush2.xpose.msra.mxu0 0.0
    %626 = vmatprep.subr.mxu0 0.0
    %627 = vmatpush2.xpose.msra.mxu0 0.0
    %628 = vmatprep.subr.mxu0 0.0
    %629 = vmatpush2.xpose.msra.mxu0 0.0
    %630 = vmatprep.subr.mxu0 0.0
    %631 = vmatpush2.xpose.msra.mxu0 0.0
    %632 = vmatprep.mubr.f32.mxu0 0.0
    %633 = vmatmul.mubr.f32.gmra.mxu0 %v564
    %v634 = vpop.f32.mrf.mxu0
    %v635 = vadd.f32 0.0, %v634
    %v636 = vpop.f32.mrf.mxu0
    %637 = vdwg.mxu0
    %v638 = vsel %vm154, %v557, -inf
    %639 = vmax.xlane.f32.xlu0 %v638
    %v640 = vpop.xlane.xlu0 %639
    %v641 = vsel %vm154, %v635, -inf
    %642 = vmax.xlane.f32.xlu0 %v641
    %v643 = vpop.xlane.xlu0 %642
    %v644 = vsub.f32 %v557, %v640
    %v645 = vsub.f32 %v635, %v643
    %v646 = vmul.f32 %v644, 1.442695
    %v647 = vpow.pop %v646
    %v648 = vmul.f32 %v645, 1.442695
    %v649 = vpow.pop %v648
    %v650 = vsel %vm154, %v647, 0.0
    %651 = vadd.xlane.f32.xlu0 %v650
    %v652 = vpop.xlane.xlu0 %651
    %v653 = vsel %vm154, %v649, 0.0
    %654 = vadd.xlane.f32.xlu0 %v653
    %v655 = vpop.xlane.xlu0 %654
    %v656 = vrcp.pop %v652
    %v657 = vrcp.pop %v655
    %v658 = vmul.f32 %v647, %v656
    %v659 = vmul.f32 %v649, %v657
    %660 = vrot.lane.b32.xlu0 %v141, 56
    %v661 = vpop.permute.xlu0 %660
    %v664 = vsel %vm154, %v658, 0
    %666 = vmatprep.subr.mxu0 0.0
    %667 = vmatpush1.msra.mxu0 0.0
    %668 = vmatprep.subr.mxu0 0.0
    %669 = vmatpush1.msra.mxu0 0.0
    %670 = vmatprep.subr.mxu0 0.0
    %671 = vmatpush1.msra.mxu0 0.0
    %672 = vmatprep.subr.mxu0 0.0
    %673 = vmatpush1.msra.mxu0 0.0
    %674 = vmatprep.subr.mxu0 0.0
    %675 = vmatpush1.msra.mxu0 0.0
    %676 = vmatprep.subr.mxu0 0.0
    %677 = vmatpush1.msra.mxu0 0.0
    %678 = vmatprep.subr.mxu0 0.0
    %679 = vmatpush1.msra.mxu0 0.0
    %680 = vmatprep.subr.mxu0 0.0
    %681 = vmatpush1.msra.mxu0 0.0
    %682 = vmatprep.subr.mxu0 0.0
    %683 = vmatpush1.msra.mxu0 0.0
    %684 = vmatprep.subr.mxu0 0.0
    %685 = vmatpush1.msra.mxu0 0.0
    %686 = vmatprep.subr.mxu0 0.0
    %687 = vmatpush1.msra.mxu0 0.0
    %688 = vmatprep.subr.mxu0 0.0
    %689 = vmatpush1.msra.mxu0 0.0
    %690 = vmatprep.subr.mxu0 0.0
    %691 = vmatpush1.msra.mxu0 0.0
    %692 = vmatprep.subr.mxu0 0.0
    %693 = vmatpush1.msra.mxu0 0.0
    %694 = vmatprep.subr.mxu0 0.0
    %695 = vmatpush1.msra.mxu0 0.0
    %696 = vmatprep.subr.mxu0 0.0
    %697 = vmatpush1.msra.mxu0 %v661
    %698 = vmatprep.subr.mxu0 0.0
    %699 = vmatpush2.msra.mxu0 0.0
    %700 = vmatprep.subr.mxu0 0.0
    %701 = vmatpush2.msra.mxu0 0.0
    %702 = vmatprep.subr.mxu0 0.0
    %703 = vmatpush2.msra.mxu0 0.0
    %704 = vmatprep.subr.mxu0 0.0
    %705 = vmatpush2.msra.mxu0 0.0
    %706 = vmatprep.subr.mxu0 0.0
    %707 = vmatpush2.msra.mxu0 0.0
    %708 = vmatprep.subr.mxu0 0.0
    %709 = vmatpush2.msra.mxu0 0.0
    %710 = vmatprep.subr.mxu0 0.0
    %711 = vmatpush2.msra.mxu0 0.0
    %712 = vmatprep.subr.mxu0 0.0
    %713 = vmatpush2.msra.mxu0 0.0
    %714 = vmatprep.subr.mxu0 0.0
    %715 = vmatpush2.msra.mxu0 0.0
    %716 = vmatprep.subr.mxu0 0.0
    %717 = vmatpush2.msra.mxu0 0.0
    %718 = vmatprep.subr.mxu0 0.0
    %719 = vmatpush2.msra.mxu0 0.0
    %720 = vmatprep.subr.mxu0 0.0
    %721 = vmatpush2.msra.mxu0 0.0
    %722 = vmatprep.subr.mxu0 0.0
    %723 = vmatpush2.msra.mxu0 0.0
    %724 = vmatprep.subr.mxu0 0.0
    %725 = vmatpush2.msra.mxu0 0.0
    %726 = vmatprep.subr.mxu0 0.0
    %727 = vmatpush2.msra.mxu0 0.0
    %728 = vmatprep.subr.mxu0 0.0
    %729 = vmatpush2.msra.mxu0 0.0
    %730 = vmatprep.mubr.f32.mxu0 0.0
    %731 = vmatmul.mubr.f32.gmra.mxu0 %v664
    %v732 = vpop.f32.mrf.mxu0
    %v733 = vadd.f32 0.0, %v732
    %v734 = vpop.f32.mrf.mxu0
    %735 = vdwg.mxu0
    %736 = vrot.lane.b32.xlu0 %v146, 56
    %v737 = vpop.permute.xlu0 %736
    %v740 = vsel %vm154, %v659, 0
    %742 = vmatprep.subr.mxu0 0.0
    %743 = vmatpush1.msra.mxu0 0.0
    %744 = vmatprep.subr.mxu0 0.0
    %745 = vmatpush1.msra.mxu0 0.0
    %746 = vmatprep.subr.mxu0 0.0
    %747 = vmatpush1.msra.mxu0 0.0
    %748 = vmatprep.subr.mxu0 0.0
    %749 = vmatpush1.msra.mxu0 0.0
    %750 = vmatprep.subr.mxu0 0.0
    %751 = vmatpush1.msra.mxu0 0.0
    %752 = vmatprep.subr.mxu0 0.0
    %753 = vmatpush1.msra.mxu0 0.0
    %754 = vmatprep.subr.mxu0 0.0
    %755 = vmatpush1.msra.mxu0 0.0
    %756 = vmatprep.subr.mxu0 0.0
    %757 = vmatpush1.msra.mxu0 0.0
    %758 = vmatprep.subr.mxu0 0.0
    %759 = vmatpush1.msra.mxu0 0.0
    %760 = vmatprep.subr.mxu0 0.0
    %761 = vmatpush1.msra.mxu0 0.0
    %762 = vmatprep.subr.mxu0 0.0
    %763 = vmatpush1.msra.mxu0 0.0
    %764 = vmatprep.subr.mxu0 0.0
    %765 = vmatpush1.msra.mxu0 0.0
    %766 = vmatprep.subr.mxu0 0.0
    %767 = vmatpush1.msra.mxu0 0.0
    %768 = vmatprep.subr.mxu0 0.0
    %769 = vmatpush1.msra.mxu0 0.0
    %770 = vmatprep.subr.mxu0 0.0
    %771 = vmatpush1.msra.mxu0 0.0
    %772 = vmatprep.subr.mxu0 0.0
    %773 = vmatpush1.msra.mxu0 %v737
    %774 = vmatprep.subr.mxu0 0.0
    %775 = vmatpush2.msra.mxu0 0.0
    %776 = vmatprep.subr.mxu0 0.0
    %777 = vmatpush2.msra.mxu0 0.0
    %778 = vmatprep.subr.mxu0 0.0
    %779 = vmatpush2.msra.mxu0 0.0
    %780 = vmatprep.subr.mxu0 0.0
    %781 = vmatpush2.msra.mxu0 0.0
    %782 = vmatprep.subr.mxu0 0.0
    %783 = vmatpush2.msra.mxu0 0.0
    %784 = vmatprep.subr.mxu0 0.0
    %785 = vmatpush2.msra.mxu0 0.0
    %786 = vmatprep.subr.mxu0 0.0
    %787 = vmatpush2.msra.mxu0 0.0
    %788 = vmatprep.subr.mxu0 0.0
    %789 = vmatpush2.msra.mxu0 0.0
    %790 = vmatprep.subr.mxu0 0.0
    %791 = vmatpush2.msra.mxu0 0.0
    %792 = vmatprep.subr.mxu0 0.0
    %793 = vmatpush2.msra.mxu0 0.0
    %794 = vmatprep.subr.mxu0 0.0
    %795 = vmatpush2.msra.mxu0 0.0
    %796 = vmatprep.subr.mxu0 0.0
    %797 = vmatpush2.msra.mxu0 0.0
    %798 = vmatprep.subr.mxu0 0.0
    %799 = vmatpush2.msra.mxu0 0.0
    %800 = vmatprep.subr.mxu0 0.0
    %801 = vmatpush2.msra.mxu0 0.0
    %802 = vmatprep.subr.mxu0 0.0
    %803 = vmatpush2.msra.mxu0 0.0
    %804 = vmatprep.subr.mxu0 0.0
    %805 = vmatpush2.msra.mxu0 0.0
    %806 = vmatprep.mubr.f32.mxu0 0.0
    %807 = vmatmul.mubr.f32.gmra.mxu0 %v740
    %v808 = vpop.f32.mrf.mxu0
    %v809 = vadd.f32 0.0, %v808
    %v810 = vpop.f32.mrf.mxu0
    %811 = vdwg.mxu0
    %812 = vrot.lane.b32.xlu0 %v149, 112
    %v813 = vpop.permute.xlu0 %812
    %814 = vrot.lane.b32.xlu0 %v141, 80
    %v815 = vpop.permute.xlu0 %814
    %v816 = vsel %vm154, %v813, 0
    %v818 = vsel %vm154, %v815, 0
    %820 = vmatprep.subr.mxu0 0.0
    %821 = vmatpush1.xpose.msra.mxu0 0.0
    %822 = vmatprep.subr.mxu0 0.0
    %823 = vmatpush1.xpose.msra.mxu0 0.0
    %824 = vmatprep.subr.mxu0 0.0
    %825 = vmatpush1.xpose.msra.mxu0 0.0
    %826 = vmatprep.subr.mxu0 0.0
    %827 = vmatpush1.xpose.msra.mxu0 0.0
    %828 = vmatprep.subr.mxu0 0.0
    %829 = vmatpush1.xpose.msra.mxu0 0.0
    %830 = vmatprep.subr.mxu0 0.0
    %831 = vmatpush1.xpose.msra.mxu0 0.0
    %832 = vmatprep.subr.mxu0 0.0
    %833 = vmatpush1.xpose.msra.mxu0 0.0
    %834 = vmatprep.subr.mxu0 0.0
    %835 = vmatpush1.xpose.msra.mxu0 0.0
    %836 = vmatprep.subr.mxu0 0.0
    %837 = vmatpush1.xpose.msra.mxu0 0.0
    %838 = vmatprep.subr.mxu0 0.0
    %839 = vmatpush1.xpose.msra.mxu0 0.0
    %840 = vmatprep.subr.mxu0 0.0
    %841 = vmatpush1.xpose.msra.mxu0 0.0
    %842 = vmatprep.subr.mxu0 0.0
    %843 = vmatpush1.xpose.msra.mxu0 0.0
    %844 = vmatprep.subr.mxu0 0.0
    %845 = vmatpush1.xpose.msra.mxu0 0.0
    %846 = vmatprep.subr.mxu0 0.0
    %847 = vmatpush1.xpose.msra.mxu0 0.0
    %848 = vmatprep.subr.mxu0 0.0
    %849 = vmatpush1.xpose.msra.mxu0 0.0
    %850 = vmatprep.subr.mxu0 0.0
    %851 = vmatpush1.xpose.msra.mxu0 %v818
    %852 = vmatprep.subr.mxu0 0.0
    %853 = vmatpush2.xpose.msra.mxu0 0.0
    %854 = vmatprep.subr.mxu0 0.0
    %855 = vmatpush2.xpose.msra.mxu0 0.0
    %856 = vmatprep.subr.mxu0 0.0
    %857 = vmatpush2.xpose.msra.mxu0 0.0
    %858 = vmatprep.subr.mxu0 0.0
    %859 = vmatpush2.xpose.msra.mxu0 0.0
    %860 = vmatprep.subr.mxu0 0.0
    %861 = vmatpush2.xpose.msra.mxu0 0.0
    %862 = vmatprep.subr.mxu0 0.0
    %863 = vmatpush2.xpose.msra.mxu0 0.0
    %864 = vmatprep.subr.mxu0 0.0
    %865 = vmatpush2.xpose.msra.mxu0 0.0
    %866 = vmatprep.subr.mxu0 0.0
    %867 = vmatpush2.xpose.msra.mxu0 0.0
    %868 = vmatprep.subr.mxu0 0.0
    %869 = vmatpush2.xpose.msra.mxu0 0.0
    %870 = vmatprep.subr.mxu0 0.0
    %871 = vmatpush2.xpose.msra.mxu0 0.0
    %872 = vmatprep.subr.mxu0 0.0
    %873 = vmatpush2.xpose.msra.mxu0 0.0
    %874 = vmatprep.subr.mxu0 0.0
    %875 = vmatpush2.xpose.msra.mxu0 0.0
    %876 = vmatprep.subr.mxu0 0.0
    %877 = vmatpush2.xpose.msra.mxu0 0.0
    %878 = vmatprep.subr.mxu0 0.0
    %879 = vmatpush2.xpose.msra.mxu0 0.0
    %880 = vmatprep.subr.mxu0 0.0
    %881 = vmatpush2.xpose.msra.mxu0 0.0
    %882 = vmatprep.subr.mxu0 0.0
    %883 = vmatpush2.xpose.msra.mxu0 0.0
    %884 = vmatprep.mubr.f32.mxu0 0.0
    %885 = vmatmul.mubr.f32.gmra.mxu0 %v816
    %v886 = vpop.f32.mrf.mxu0
    %v887 = vadd.f32 0.0, %v886
    %v888 = vpop.f32.mrf.mxu0
    %889 = vdwg.mxu0
    %890 = vrot.lane.b32.xlu0 %v150, 112
    %v891 = vpop.permute.xlu0 %890
    %892 = vrot.lane.b32.xlu0 %v146, 80
    %v893 = vpop.permute.xlu0 %892
    %v894 = vsel %vm154, %v891, 0
    %v896 = vsel %vm154, %v893, 0
    %898 = vmatprep.subr.mxu0 0.0
    %899 = vmatpush1.xpose.msra.mxu0 0.0
    %900 = vmatprep.subr.mxu0 0.0
    %901 = vmatpush1.xpose.msra.mxu0 0.0
    %902 = vmatprep.subr.mxu0 0.0
    %903 = vmatpush1.xpose.msra.mxu0 0.0
    %904 = vmatprep.subr.mxu0 0.0
    %905 = vmatpush1.xpose.msra.mxu0 0.0
    %906 = vmatprep.subr.mxu0 0.0
    %907 = vmatpush1.xpose.msra.mxu0 0.0
    %908 = vmatprep.subr.mxu0 0.0
    %909 = vmatpush1.xpose.msra.mxu0 0.0
    %910 = vmatprep.subr.mxu0 0.0
    %911 = vmatpush1.xpose.msra.mxu0 0.0
    %912 = vmatprep.subr.mxu0 0.0
    %913 = vmatpush1.xpose.msra.mxu0 0.0
    %914 = vmatprep.subr.mxu0 0.0
    %915 = vmatpush1.xpose.msra.mxu0 0.0
    %916 = vmatprep.subr.mxu0 0.0
    %917 = vmatpush1.xpose.msra.mxu0 0.0
    %918 = vmatprep.subr.mxu0 0.0
    %919 = vmatpush1.xpose.msra.mxu0 0.0
    %920 = vmatprep.subr.mxu0 0.0
    %921 = vmatpush1.xpose.msra.mxu0 0.0
    %922 = vmatprep.subr.mxu0 0.0
    %923 = vmatpush1.xpose.msra.mxu0 0.0
    %924 = vmatprep.subr.mxu0 0.0
    %925 = vmatpush1.xpose.msra.mxu0 0.0
    %926 = vmatprep.subr.mxu0 0.0
    %927 = vmatpush1.xpose.msra.mxu0 0.0
    %928 = vmatprep.subr.mxu0 0.0
    %929 = vmatpush1.xpose.msra.mxu0 %v896
    %930 = vmatprep.subr.mxu0 0.0
    %931 = vmatpush2.xpose.msra.mxu0 0.0
    %932 = vmatprep.subr.mxu0 0.0
    %933 = vmatpush2.xpose.msra.mxu0 0.0
    %934 = vmatprep.subr.mxu0 0.0
    %935 = vmatpush2.xpose.msra.mxu0 0.0
    %936 = vmatprep.subr.mxu0 0.0
    %937 = vmatpush2.xpose.msra.mxu0 0.0
    %938 = vmatprep.subr.mxu0 0.0
    %939 = vmatpush2.xpose.msra.mxu0 0.0
    %940 = vmatprep.subr.mxu0 0.0
    %941 = vmatpush2.xpose.msra.mxu0 0.0
    %942 = vmatprep.subr.mxu0 0.0
    %943 = vmatpush2.xpose.msra.mxu0 0.0
    %944 = vmatprep.subr.mxu0 0.0
    %945 = vmatpush2.xpose.msra.mxu0 0.0
    %946 = vmatprep.subr.mxu0 0.0
    %947 = vmatpush2.xpose.msra.mxu0 0.0
    %948 = vmatprep.subr.mxu0 0.0
    %949 = vmatpush2.xpose.msra.mxu0 0.0
    %950 = vmatprep.subr.mxu0 0.0
    %951 = vmatpush2.xpose.msra.mxu0 0.0
    %952 = vmatprep.subr.mxu0 0.0
    %953 = vmatpush2.xpose.msra.mxu0 0.0
    %954 = vmatprep.subr.mxu0 0.0
    %955 = vmatpush2.xpose.msra.mxu0 0.0
    %956 = vmatprep.subr.mxu0 0.0
    %957 = vmatpush2.xpose.msra.mxu0 0.0
    %958 = vmatprep.subr.mxu0 0.0
    %959 = vmatpush2.xpose.msra.mxu0 0.0
    %960 = vmatprep.subr.mxu0 0.0
    %961 = vmatpush2.xpose.msra.mxu0 0.0
    %962 = vmatprep.mubr.f32.mxu0 0.0
    %963 = vmatmul.mubr.f32.gmra.mxu0 %v894
    %v964 = vpop.f32.mrf.mxu0
    %v965 = vadd.f32 0.0, %v964
    %v966 = vpop.f32.mrf.mxu0
    %967 = vdwg.mxu0
    %v968 = vsel %vm154, %v887, -inf
    %969 = vmax.xlane.f32.xlu0 %v968
    %v970 = vpop.xlane.xlu0 %969
    %v971 = vsel %vm154, %v965, -inf
    %972 = vmax.xlane.f32.xlu0 %v971
    %v973 = vpop.xlane.xlu0 %972
    %v974 = vsub.f32 %v887, %v970
    %v975 = vsub.f32 %v965, %v973
    %v976 = vmul.f32 %v974, 1.442695
    %v977 = vpow.pop %v976
    %v978 = vmul.f32 %v975, 1.442695
    %v979 = vpow.pop %v978
    %v980 = vsel %vm154, %v977, 0.0
    %981 = vadd.xlane.f32.xlu0 %v980
    %v982 = vpop.xlane.xlu0 %981
    %v983 = vsel %vm154, %v979, 0.0
    %984 = vadd.xlane.f32.xlu0 %v983
    %v985 = vpop.xlane.xlu0 %984
    %v986 = vrcp.pop %v982
    %v987 = vrcp.pop %v985
    %v988 = vmul.f32 %v977, %v986
    %v989 = vmul.f32 %v979, %v987
    %990 = vrot.lane.b32.xlu0 %v141, 48
    %v991 = vpop.permute.xlu0 %990
    %v994 = vsel %vm154, %v988, 0
    %996 = vmatprep.subr.mxu0 0.0
    %997 = vmatpush1.msra.mxu0 0.0
    %998 = vmatprep.subr.mxu0 0.0
    %999 = vmatpush1.msra.mxu0 0.0
    %1000 = vmatprep.subr.mxu0 0.0
    %1001 = vmatpush1.msra.mxu0 0.0
    %1002 = vmatprep.subr.mxu0 0.0
    %1003 = vmatpush1.msra.mxu0 0.0
    %1004 = vmatprep.subr.mxu0 0.0
    %1005 = vmatpush1.msra.mxu0 0.0
    %1006 = vmatprep.subr.mxu0 0.0
    %1007 = vmatpush1.msra.mxu0 0.0
    %1008 = vmatprep.subr.mxu0 0.0
    %1009 = vmatpush1.msra.mxu0 0.0
    %1010 = vmatprep.subr.mxu0 0.0
    %1011 = vmatpush1.msra.mxu0 0.0
    %1012 = vmatprep.subr.mxu0 0.0
    %1013 = vmatpush1.msra.mxu0 0.0
    %1014 = vmatprep.subr.mxu0 0.0
    %1015 = vmatpush1.msra.mxu0 0.0
    %1016 = vmatprep.subr.mxu0 0.0
    %1017 = vmatpush1.msra.mxu0 0.0
    %1018 = vmatprep.subr.mxu0 0.0
    %1019 = vmatpush1.msra.mxu0 0.0
    %1020 = vmatprep.subr.mxu0 0.0
    %1021 = vmatpush1.msra.mxu0 0.0
    %1022 = vmatprep.subr.mxu0 0.0
    %1023 = vmatpush1.msra.mxu0 0.0
    %1024 = vmatprep.subr.mxu0 0.0
    %1025 = vmatpush1.msra.mxu0 0.0
    %1026 = vmatprep.subr.mxu0 0.0
    %1027 = vmatpush1.msra.mxu0 %v991
    %1028 = vmatprep.subr.mxu0 0.0
    %1029 = vmatpush2.msra.mxu0 0.0
    %1030 = vmatprep.subr.mxu0 0.0
    %1031 = vmatpush2.msra.mxu0 0.0
    %1032 = vmatprep.subr.mxu0 0.0
    %1033 = vmatpush2.msra.mxu0 0.0
    %1034 = vmatprep.subr.mxu0 0.0
    %1035 = vmatpush2.msra.mxu0 0.0
    %1036 = vmatprep.subr.mxu0 0.0
    %1037 = vmatpush2.msra.mxu0 0.0
    %1038 = vmatprep.subr.mxu0 0.0
    %1039 = vmatpush2.msra.mxu0 0.0
    %1040 = vmatprep.subr.mxu0 0.0
    %1041 = vmatpush2.msra.mxu0 0.0
    %1042 = vmatprep.subr.mxu0 0.0
    %1043 = vmatpush2.msra.mxu0 0.0
    %1044 = vmatprep.subr.mxu0 0.0
    %1045 = vmatpush2.msra.mxu0 0.0
    %1046 = vmatprep.subr.mxu0 0.0
    %1047 = vmatpush2.msra.mxu0 0.0
    %1048 = vmatprep.subr.mxu0 0.0
    %1049 = vmatpush2.msra.mxu0 0.0
    %1050 = vmatprep.subr.mxu0 0.0
    %1051 = vmatpush2.msra.mxu0 0.0
    %1052 = vmatprep.subr.mxu0 0.0
    %1053 = vmatpush2.msra.mxu0 0.0
    %1054 = vmatprep.subr.mxu0 0.0
    %1055 = vmatpush2.msra.mxu0 0.0
    %1056 = vmatprep.subr.mxu0 0.0
    %1057 = vmatpush2.msra.mxu0 0.0
    %1058 = vmatprep.subr.mxu0 0.0
    %1059 = vmatpush2.msra.mxu0 0.0
    %1060 = vmatprep.mubr.f32.mxu0 0.0
    %1061 = vmatmul.mubr.f32.gmra.mxu0 %v994
    %v1062 = vpop.f32.mrf.mxu0
    %v1063 = vadd.f32 0.0, %v1062
    %v1064 = vpop.f32.mrf.mxu0
    %1065 = vdwg.mxu0
    %1066 = vrot.lane.b32.xlu0 %v146, 48
    %v1067 = vpop.permute.xlu0 %1066
    %v1070 = vsel %vm154, %v989, 0
    %1072 = vmatprep.subr.mxu0 0.0
    %1073 = vmatpush1.msra.mxu0 0.0
    %1074 = vmatprep.subr.mxu0 0.0
    %1075 = vmatpush1.msra.mxu0 0.0
    %1076 = vmatprep.subr.mxu0 0.0
    %1077 = vmatpush1.msra.mxu0 0.0
    %1078 = vmatprep.subr.mxu0 0.0
    %1079 = vmatpush1.msra.mxu0 0.0
    %1080 = vmatprep.subr.mxu0 0.0
    %1081 = vmatpush1.msra.mxu0 0.0
    %1082 = vmatprep.subr.mxu0 0.0
    %1083 = vmatpush1.msra.mxu0 0.0
    %1084 = vmatprep.subr.mxu0 0.0
    %1085 = vmatpush1.msra.mxu0 0.0
    %1086 = vmatprep.subr.mxu0 0.0
    %1087 = vmatpush1.msra.mxu0 0.0
    %1088 = vmatprep.subr.mxu0 0.0
    %1089 = vmatpush1.msra.mxu0 0.0
    %1090 = vmatprep.subr.mxu0 0.0
    %1091 = vmatpush1.msra.mxu0 0.0
    %1092 = vmatprep.subr.mxu0 0.0
    %1093 = vmatpush1.msra.mxu0 0.0
    %1094 = vmatprep.subr.mxu0 0.0
    %1095 = vmatpush1.msra.mxu0 0.0
    %1096 = vmatprep.subr.mxu0 0.0
    %1097 = vmatpush1.msra.mxu0 0.0
    %1098 = vmatprep.subr.mxu0 0.0
    %1099 = vmatpush1.msra.mxu0 0.0
    %1100 = vmatprep.subr.mxu0 0.0
    %1101 = vmatpush1.msra.mxu0 0.0
    %1102 = vmatprep.subr.mxu0 0.0
    %1103 = vmatpush1.msra.mxu0 %v1067
    %1104 = vmatprep.subr.mxu0 0.0
    %1105 = vmatpush2.msra.mxu0 0.0
    %1106 = vmatprep.subr.mxu0 0.0
    %1107 = vmatpush2.msra.mxu0 0.0
    %1108 = vmatprep.subr.mxu0 0.0
    %1109 = vmatpush2.msra.mxu0 0.0
    %1110 = vmatprep.subr.mxu0 0.0
    %1111 = vmatpush2.msra.mxu0 0.0
    %1112 = vmatprep.subr.mxu0 0.0
    %1113 = vmatpush2.msra.mxu0 0.0
    %1114 = vmatprep.subr.mxu0 0.0
    %1115 = vmatpush2.msra.mxu0 0.0
    %1116 = vmatprep.subr.mxu0 0.0
    %1117 = vmatpush2.msra.mxu0 0.0
    %1118 = vmatprep.subr.mxu0 0.0
    %1119 = vmatpush2.msra.mxu0 0.0
    %1120 = vmatprep.subr.mxu0 0.0
    %1121 = vmatpush2.msra.mxu0 0.0
    %1122 = vmatprep.subr.mxu0 0.0
    %1123 = vmatpush2.msra.mxu0 0.0
    %1124 = vmatprep.subr.mxu0 0.0
    %1125 = vmatpush2.msra.mxu0 0.0
    %1126 = vmatprep.subr.mxu0 0.0
    %1127 = vmatpush2.msra.mxu0 0.0
    %1128 = vmatprep.subr.mxu0 0.0
    %1129 = vmatpush2.msra.mxu0 0.0
    %1130 = vmatprep.subr.mxu0 0.0
    %1131 = vmatpush2.msra.mxu0 0.0
    %1132 = vmatprep.subr.mxu0 0.0
    %1133 = vmatpush2.msra.mxu0 0.0
    %1134 = vmatprep.subr.mxu0 0.0
    %1135 = vmatpush2.msra.mxu0 0.0
    %1136 = vmatprep.mubr.f32.mxu0 0.0
    %1137 = vmatmul.mubr.f32.gmra.mxu0 %v1070
    %v1138 = vpop.f32.mrf.mxu0
    %v1139 = vadd.f32 0.0, %v1138
    %v1140 = vpop.f32.mrf.mxu0
    %1141 = vdwg.mxu0
    %1142 = vrot.lane.b32.xlu0 %v149, 104
    %v1143 = vpop.permute.xlu0 %1142
    %1144 = vrot.lane.b32.xlu0 %v141, 72
    %v1145 = vpop.permute.xlu0 %1144
    %v1146 = vsel %vm154, %v1143, 0
    %v1148 = vsel %vm154, %v1145, 0
    %1150 = vmatprep.subr.mxu0 0.0
    %1151 = vmatpush1.xpose.msra.mxu0 0.0
    %1152 = vmatprep.subr.mxu0 0.0
    %1153 = vmatpush1.xpose.msra.mxu0 0.0
    %1154 = vmatprep.subr.mxu0 0.0
    %1155 = vmatpush1.xpose.msra.mxu0 0.0
    %1156 = vmatprep.subr.mxu0 0.0
    %1157 = vmatpush1.xpose.msra.mxu0 0.0
    %1158 = vmatprep.subr.mxu0 0.0
    %1159 = vmatpush1.xpose.msra.mxu0 0.0
    %1160 = vmatprep.subr.mxu0 0.0
    %1161 = vmatpush1.xpose.msra.mxu0 0.0
    %1162 = vmatprep.subr.mxu0 0.0
    %1163 = vmatpush1.xpose.msra.mxu0 0.0
    %1164 = vmatprep.subr.mxu0 0.0
    %1165 = vmatpush1.xpose.msra.mxu0 0.0
    %1166 = vmatprep.subr.mxu0 0.0
    %1167 = vmatpush1.xpose.msra.mxu0 0.0
    %1168 = vmatprep.subr.mxu0 0.0
    %1169 = vmatpush1.xpose.msra.mxu0 0.0
    %1170 = vmatprep.subr.mxu0 0.0
    %1171 = vmatpush1.xpose.msra.mxu0 0.0
    %1172 = vmatprep.subr.mxu0 0.0
    %1173 = vmatpush1.xpose.msra.mxu0 0.0
    %1174 = vmatprep.subr.mxu0 0.0
    %1175 = vmatpush1.xpose.msra.mxu0 0.0
    %1176 = vmatprep.subr.mxu0 0.0
    %1177 = vmatpush1.xpose.msra.mxu0 0.0
    %1178 = vmatprep.subr.mxu0 0.0
    %1179 = vmatpush1.xpose.msra.mxu0 0.0
    %1180 = vmatprep.subr.mxu0 0.0
    %1181 = vmatpush1.xpose.msra.mxu0 %v1148
    %1182 = vmatprep.subr.mxu0 0.0
    %1183 = vmatpush2.xpose.msra.mxu0 0.0
    %1184 = vmatprep.subr.mxu0 0.0
    %1185 = vmatpush2.xpose.msra.mxu0 0.0
    %1186 = vmatprep.subr.mxu0 0.0
    %1187 = vmatpush2.xpose.msra.mxu0 0.0
    %1188 = vmatprep.subr.mxu0 0.0
    %1189 = vmatpush2.xpose.msra.mxu0 0.0
    %1190 = vmatprep.subr.mxu0 0.0
    %1191 = vmatpush2.xpose.msra.mxu0 0.0
    %1192 = vmatprep.subr.mxu0 0.0
    %1193 = vmatpush2.xpose.msra.mxu0 0.0
    %1194 = vmatprep.subr.mxu0 0.0
    %1195 = vmatpush2.xpose.msra.mxu0 0.0
    %1196 = vmatprep.subr.mxu0 0.0
    %1197 = vmatpush2.xpose.msra.mxu0 0.0
    %1198 = vmatprep.subr.mxu0 0.0
    %1199 = vmatpush2.xpose.msra.mxu0 0.0
    %1200 = vmatprep.subr.mxu0 0.0
    %1201 = vmatpush2.xpose.msra.mxu0 0.0
    %1202 = vmatprep.subr.mxu0 0.0
    %1203 = vmatpush2.xpose.msra.mxu0 0.0
    %1204 = vmatprep.subr.mxu0 0.0
    %1205 = vmatpush2.xpose.msra.mxu0 0.0
    %1206 = vmatprep.subr.mxu0 0.0
    %1207 = vmatpush2.xpose.msra.mxu0 0.0
    %1208 = vmatprep.subr.mxu0 0.0
    %1209 = vmatpush2.xpose.msra.mxu0 0.0
    %1210 = vmatprep.subr.mxu0 0.0
    %1211 = vmatpush2.xpose.msra.mxu0 0.0
    %1212 = vmatprep.subr.mxu0 0.0
    %1213 = vmatpush2.xpose.msra.mxu0 0.0
    %1214 = vmatprep.mubr.f32.mxu0 0.0
    %1215 = vmatmul.mubr.f32.gmra.mxu0 %v1146
    %v1216 = vpop.f32.mrf.mxu0
    %v1217 = vadd.f32 0.0, %v1216
    %v1218 = vpop.f32.mrf.mxu0
    %1219 = vdwg.mxu0
    %1220 = vrot.lane.b32.xlu0 %v150, 104
    %v1221 = vpop.permute.xlu0 %1220
    %1222 = vrot.lane.b32.xlu0 %v146, 72
    %v1223 = vpop.permute.xlu0 %1222
    %v1224 = vsel %vm154, %v1221, 0
    %v1226 = vsel %vm154, %v1223, 0
    %1228 = vmatprep.subr.mxu0 0.0
    %1229 = vmatpush1.xpose.msra.mxu0 0.0
    %1230 = vmatprep.subr.mxu0 0.0
    %1231 = vmatpush1.xpose.msra.mxu0 0.0
    %1232 = vmatprep.subr.mxu0 0.0
    %1233 = vmatpush1.xpose.msra.mxu0 0.0
    %1234 = vmatprep.subr.mxu0 0.0
    %1235 = vmatpush1.xpose.msra.mxu0 0.0
    %1236 = vmatprep.subr.mxu0 0.0
    %1237 = vmatpush1.xpose.msra.mxu0 0.0
    %1238 = vmatprep.subr.mxu0 0.0
    %1239 = vmatpush1.xpose.msra.mxu0 0.0
    %1240 = vmatprep.subr.mxu0 0.0
    %1241 = vmatpush1.xpose.msra.mxu0 0.0
    %1242 = vmatprep.subr.mxu0 0.0
    %1243 = vmatpush1.xpose.msra.mxu0 0.0
    %1244 = vmatprep.subr.mxu0 0.0
    %1245 = vmatpush1.xpose.msra.mxu0 0.0
    %1246 = vmatprep.subr.mxu0 0.0
    %1247 = vmatpush1.xpose.msra.mxu0 0.0
    %1248 = vmatprep.subr.mxu0 0.0
    %1249 = vmatpush1.xpose.msra.mxu0 0.0
    %1250 = vmatprep.subr.mxu0 0.0
    %1251 = vmatpush1.xpose.msra.mxu0 0.0
    %1252 = vmatprep.subr.mxu0 0.0
    %1253 = vmatpush1.xpose.msra.mxu0 0.0
    %1254 = vmatprep.subr.mxu0 0.0
    %1255 = vmatpush1.xpose.msra.mxu0 0.0
    %1256 = vmatprep.subr.mxu0 0.0
    %1257 = vmatpush1.xpose.msra.mxu0 0.0
    %1258 = vmatprep.subr.mxu0 0.0
    %1259 = vmatpush1.xpose.msra.mxu0 %v1226
    %1260 = vmatprep.subr.mxu0 0.0
    %1261 = vmatpush2.xpose.msra.mxu0 0.0
    %1262 = vmatprep.subr.mxu0 0.0
    %1263 = vmatpush2.xpose.msra.mxu0 0.0
    %1264 = vmatprep.subr.mxu0 0.0
    %1265 = vmatpush2.xpose.msra.mxu0 0.0
    %1266 = vmatprep.subr.mxu0 0.0
    %1267 = vmatpush2.xpose.msra.mxu0 0.0
    %1268 = vmatprep.subr.mxu0 0.0
    %1269 = vmatpush2.xpose.msra.mxu0 0.0
    %1270 = vmatprep.subr.mxu0 0.0
    %1271 = vmatpush2.xpose.msra.mxu0 0.0
    %1272 = vmatprep.subr.mxu0 0.0
    %1273 = vmatpush2.xpose.msra.mxu0 0.0
    %1274 = vmatprep.subr.mxu0 0.0
    %1275 = vmatpush2.xpose.msra.mxu0 0.0
    %1276 = vmatprep.subr.mxu0 0.0
    %1277 = vmatpush2.xpose.msra.mxu0 0.0
    %1278 = vmatprep.subr.mxu0 0.0
    %1279 = vmatpush2.xpose.msra.mxu0 0.0
    %1280 = vmatprep.subr.mxu0 0.0
    %1281 = vmatpush2.xpose.msra.mxu0 0.0
    %1282 = vmatprep.subr.mxu0 0.0
    %1283 = vmatpush2.xpose.msra.mxu0 0.0
    %1284 = vmatprep.subr.mxu0 0.0
    %1285 = vmatpush2.xpose.msra.mxu0 0.0
    %1286 = vmatprep.subr.mxu0 0.0
    %1287 = vmatpush2.xpose.msra.mxu0 0.0
    %1288 = vmatprep.subr.mxu0 0.0
    %1289 = vmatpush2.xpose.msra.mxu0 0.0
    %1290 = vmatprep.subr.mxu0 0.0
    %1291 = vmatpush2.xpose.msra.mxu0 0.0
    %1292 = vmatprep.mubr.f32.mxu0 0.0
    %1293 = vmatmul.mubr.f32.gmra.mxu0 %v1224
    %v1294 = vpop.f32.mrf.mxu0
    %v1295 = vadd.f32 0.0, %v1294
    %v1296 = vpop.f32.mrf.mxu0
    %1297 = vdwg.mxu0
    %v1298 = vsel %vm154, %v1217, -inf
    %1299 = vmax.xlane.f32.xlu0 %v1298
    %v1300 = vpop.xlane.xlu0 %1299
    %v1301 = vsel %vm154, %v1295, -inf
    %1302 = vmax.xlane.f32.xlu0 %v1301
    %v1303 = vpop.xlane.xlu0 %1302
    %v1304 = vsub.f32 %v1217, %v1300
    %v1305 = vsub.f32 %v1295, %v1303
    %v1306 = vmul.f32 %v1304, 1.442695
    %v1307 = vpow.pop %v1306
    %v1308 = vmul.f32 %v1305, 1.442695
    %v1309 = vpow.pop %v1308
    %v1310 = vsel %vm154, %v1307, 0.0
    %1311 = vadd.xlane.f32.xlu0 %v1310
    %v1312 = vpop.xlane.xlu0 %1311
    %v1313 = vsel %vm154, %v1309, 0.0
    %1314 = vadd.xlane.f32.xlu0 %v1313
    %v1315 = vpop.xlane.xlu0 %1314
    %v1316 = vrcp.pop %v1312
    %v1317 = vrcp.pop %v1315
    %v1318 = vmul.f32 %v1307, %v1316
    %v1319 = vmul.f32 %v1309, %v1317
    %1320 = vrot.lane.b32.xlu0 %v141, 40
    %v1321 = vpop.permute.xlu0 %1320
    %v1324 = vsel %vm154, %v1318, 0
    %1326 = vmatprep.subr.mxu0 0.0
    %1327 = vmatpush1.msra.mxu0 0.0
    %1328 = vmatprep.subr.mxu0 0.0
    %1329 = vmatpush1.msra.mxu0 0.0
    %1330 = vmatprep.subr.mxu0 0.0
    %1331 = vmatpush1.msra.mxu0 0.0
    %1332 = vmatprep.subr.mxu0 0.0
    %1333 = vmatpush1.msra.mxu0 0.0
    %1334 = vmatprep.subr.mxu0 0.0
    %1335 = vmatpush1.msra.mxu0 0.0
    %1336 = vmatprep.subr.mxu0 0.0
    %1337 = vmatpush1.msra.mxu0 0.0
    %1338 = vmatprep.subr.mxu0 0.0
    %1339 = vmatpush1.msra.mxu0 0.0
    %1340 = vmatprep.subr.mxu0 0.0
    %1341 = vmatpush1.msra.mxu0 0.0
    %1342 = vmatprep.subr.mxu0 0.0
    %1343 = vmatpush1.msra.mxu0 0.0
    %1344 = vmatprep.subr.mxu0 0.0
    %1345 = vmatpush1.msra.mxu0 0.0
    %1346 = vmatprep.subr.mxu0 0.0
    %1347 = vmatpush1.msra.mxu0 0.0
    %1348 = vmatprep.subr.mxu0 0.0
    %1349 = vmatpush1.msra.mxu0 0.0
    %1350 = vmatprep.subr.mxu0 0.0
    %1351 = vmatpush1.msra.mxu0 0.0
    %1352 = vmatprep.subr.mxu0 0.0
    %1353 = vmatpush1.msra.mxu0 0.0
    %1354 = vmatprep.subr.mxu0 0.0
    %1355 = vmatpush1.msra.mxu0 0.0
    %1356 = vmatprep.subr.mxu0 0.0
    %1357 = vmatpush1.msra.mxu0 %v1321
    %1358 = vmatprep.subr.mxu0 0.0
    %1359 = vmatpush2.msra.mxu0 0.0
    %1360 = vmatprep.subr.mxu0 0.0
    %1361 = vmatpush2.msra.mxu0 0.0
    %1362 = vmatprep.subr.mxu0 0.0
    %1363 = vmatpush2.msra.mxu0 0.0
    %1364 = vmatprep.subr.mxu0 0.0
    %1365 = vmatpush2.msra.mxu0 0.0
    %1366 = vmatprep.subr.mxu0 0.0
    %1367 = vmatpush2.msra.mxu0 0.0
    %1368 = vmatprep.subr.mxu0 0.0
    %1369 = vmatpush2.msra.mxu0 0.0
    %1370 = vmatprep.subr.mxu0 0.0
    %1371 = vmatpush2.msra.mxu0 0.0
    %1372 = vmatprep.subr.mxu0 0.0
    %1373 = vmatpush2.msra.mxu0 0.0
    %1374 = vmatprep.subr.mxu0 0.0
    %1375 = vmatpush2.msra.mxu0 0.0
    %1376 = vmatprep.subr.mxu0 0.0
    %1377 = vmatpush2.msra.mxu0 0.0
    %1378 = vmatprep.subr.mxu0 0.0
    %1379 = vmatpush2.msra.mxu0 0.0
    %1380 = vmatprep.subr.mxu0 0.0
    %1381 = vmatpush2.msra.mxu0 0.0
    %1382 = vmatprep.subr.mxu0 0.0
    %1383 = vmatpush2.msra.mxu0 0.0
    %1384 = vmatprep.subr.mxu0 0.0
    %1385 = vmatpush2.msra.mxu0 0.0
    %1386 = vmatprep.subr.mxu0 0.0
    %1387 = vmatpush2.msra.mxu0 0.0
    %1388 = vmatprep.subr.mxu0 0.0
    %1389 = vmatpush2.msra.mxu0 0.0
    %1390 = vmatprep.mubr.f32.mxu0 0.0
    %1391 = vmatmul.mubr.f32.gmra.mxu0 %v1324
    %v1392 = vpop.f32.mrf.mxu0
    %v1393 = vadd.f32 0.0, %v1392
    %v1394 = vpop.f32.mrf.mxu0
    %1395 = vdwg.mxu0
    %1396 = vrot.lane.b32.xlu0 %v146, 40
    %v1397 = vpop.permute.xlu0 %1396
    %v1400 = vsel %vm154, %v1319, 0
    %1402 = vmatprep.subr.mxu0 0.0
    %1403 = vmatpush1.msra.mxu0 0.0
    %1404 = vmatprep.subr.mxu0 0.0
    %1405 = vmatpush1.msra.mxu0 0.0
    %1406 = vmatprep.subr.mxu0 0.0
    %1407 = vmatpush1.msra.mxu0 0.0
    %1408 = vmatprep.subr.mxu0 0.0
    %1409 = vmatpush1.msra.mxu0 0.0
    %1410 = vmatprep.subr.mxu0 0.0
    %1411 = vmatpush1.msra.mxu0 0.0
    %1412 = vmatprep.subr.mxu0 0.0
    %1413 = vmatpush1.msra.mxu0 0.0
    %1414 = vmatprep.subr.mxu0 0.0
    %1415 = vmatpush1.msra.mxu0 0.0
    %1416 = vmatprep.subr.mxu0 0.0
    %1417 = vmatpush1.msra.mxu0 0.0
    %1418 = vmatprep.subr.mxu0 0.0
    %1419 = vmatpush1.msra.mxu0 0.0
    %1420 = vmatprep.subr.mxu0 0.0
    %1421 = vmatpush1.msra.mxu0 0.0
    %1422 = vmatprep.subr.mxu0 0.0
    %1423 = vmatpush1.msra.mxu0 0.0
    %1424 = vmatprep.subr.mxu0 0.0
    %1425 = vmatpush1.msra.mxu0 0.0
    %1426 = vmatprep.subr.mxu0 0.0
    %1427 = vmatpush1.msra.mxu0 0.0
    %1428 = vmatprep.subr.mxu0 0.0
    %1429 = vmatpush1.msra.mxu0 0.0
    %1430 = vmatprep.subr.mxu0 0.0
    %1431 = vmatpush1.msra.mxu0 0.0
    %1432 = vmatprep.subr.mxu0 0.0
    %1433 = vmatpush1.msra.mxu0 %v1397
    %1434 = vmatprep.subr.mxu0 0.0
    %1435 = vmatpush2.msra.mxu0 0.0
    %1436 = vmatprep.subr.mxu0 0.0
    %1437 = vmatpush2.msra.mxu0 0.0
    %1438 = vmatprep.subr.mxu0 0.0
    %1439 = vmatpush2.msra.mxu0 0.0
    %1440 = vmatprep.subr.mxu0 0.0
    %1441 = vmatpush2.msra.mxu0 0.0
    %1442 = vmatprep.subr.mxu0 0.0
    %1443 = vmatpush2.msra.mxu0 0.0
    %1444 = vmatprep.subr.mxu0 0.0
    %1445 = vmatpush2.msra.mxu0 0.0
    %1446 = vmatprep.subr.mxu0 0.0
    %1447 = vmatpush2.msra.mxu0 0.0
    %1448 = vmatprep.subr.mxu0 0.0
    %1449 = vmatpush2.msra.mxu0 0.0
    %1450 = vmatprep.subr.mxu0 0.0
    %1451 = vmatpush2.msra.mxu0 0.0
    %1452 = vmatprep.subr.mxu0 0.0
    %1453 = vmatpush2.msra.mxu0 0.0
    %1454 = vmatprep.subr.mxu0 0.0
    %1455 = vmatpush2.msra.mxu0 0.0
    %1456 = vmatprep.subr.mxu0 0.0
    %1457 = vmatpush2.msra.mxu0 0.0
    %1458 = vmatprep.subr.mxu0 0.0
    %1459 = vmatpush2.msra.mxu0 0.0
    %1460 = vmatprep.subr.mxu0 0.0
    %1461 = vmatpush2.msra.mxu0 0.0
    %1462 = vmatprep.subr.mxu0 0.0
    %1463 = vmatpush2.msra.mxu0 0.0
    %1464 = vmatprep.subr.mxu0 0.0
    %1465 = vmatpush2.msra.mxu0 0.0
    %1466 = vmatprep.mubr.f32.mxu0 0.0
    %1467 = vmatmul.mubr.f32.gmra.mxu0 %v1400
    %v1468 = vpop.f32.mrf.mxu0
    %v1469 = vadd.f32 0.0, %v1468
    %v1470 = vpop.f32.mrf.mxu0
    %1471 = vdwg.mxu0
    %1474 = vrot.lane.b32.xlu0 %v733, 8
    %v1475 = vpop.permute.xlu0 %1474
    %1476 = vrot.lane.b32.xlu0 %v809, 8
    %v1477 = vpop.permute.xlu0 %1476
    %1482 = vrot.lane.b32.xlu0 %v1063, 16
    %v1483 = vpop.permute.xlu0 %1482
    %1484 = vrot.lane.b32.xlu0 %v1139, 16
    %v1485 = vpop.permute.xlu0 %1484
    %1490 = vrot.lane.b32.xlu0 %v1393, 24
    %v1491 = vpop.permute.xlu0 %1490
    %1492 = vrot.lane.b32.xlu0 %v1469, 24
    %v1493 = vpop.permute.xlu0 %1492
    %v1496 = vsel %vm154, %v403, %v1475
    %v1497 = vsel %vm154, %v479, %v1477
    %vm1498 = vcmask 130048
    %v1499 = vsel %vm1498, %v1496, %v1483
    %v1500 = vsel %vm1498, %v1497, %v1485
    %vm1501 = vcmask 195584
    %v1502 = vsel %vm1501, %v1499, %v1491
    %v1503 = vsel %vm1501, %v1500, %v1493
    %v1504 = vlaneseq
    %v1505 = vshrl.u32 %v1504, 7
    %v1506 = vsub.s32 1, %v1505
    %v1507 = vrot.slane %v62, %v1506
    %v1509 = vsel %vm67, %v1502, 0
    %v1512 = vsel %vm67, %v1503, 0
    %1514 = vmatprep.subr.mxu0 0.0
    %1515 = vmatpush1.msra.mxu0 0.0
    %1516 = vmatprep.subr.mxu0 0.0
    %1517 = vmatpush1.msra.mxu0 0.0
    %1518 = vmatprep.subr.mxu0 0.0
    %1519 = vmatpush1.msra.mxu0 0.0
    %1520 = vmatprep.subr.mxu0 0.0
    %1521 = vmatpush1.msra.mxu0 0.0
    %1522 = vmatprep.subr.mxu0 0.0
    %1523 = vmatpush1.msra.mxu0 0.0
    %1524 = vmatprep.subr.mxu0 0.0
    %1525 = vmatpush1.msra.mxu0 0.0
    %1526 = vmatprep.subr.mxu0 0.0
    %1527 = vmatpush1.msra.mxu0 0.0
    %1528 = vmatprep.subr.mxu0 0.0
    %1529 = vmatpush1.msra.mxu0 0.0
    %1530 = vmatprep.subr.mxu0 0.0
    %1531 = vmatpush1.msra.mxu0 0.0
    %1532 = vmatprep.subr.mxu0 0.0
    %1533 = vmatpush1.msra.mxu0 0.0
    %1534 = vmatprep.subr.mxu0 0.0
    %1535 = vmatpush1.msra.mxu0 0.0
    %1536 = vmatprep.subr.mxu0 0.0
    %1537 = vmatpush1.msra.mxu0 0.0
    %1538 = vmatprep.subr.mxu0 0.0
    %1539 = vmatpush1.msra.mxu0 %v49
    %1540 = vmatprep.subr.mxu0 0.0
    %1541 = vmatpush1.msra.mxu0 %v48
    %1542 = vmatprep.subr.mxu0 0.0
    %1543 = vmatpush1.msra.mxu0 %v47
    %1544 = vmatprep.subr.mxu0 0.0
    %1545 = vmatpush1.msra.mxu0 %v46
    %1546 = vmatprep.subr.mxu0 0.0
    %1547 = vmatpush2.msra.mxu0 0.0
    %1548 = vmatprep.subr.mxu0 0.0
    %1549 = vmatpush2.msra.mxu0 0.0
    %1550 = vmatprep.subr.mxu0 0.0
    %1551 = vmatpush2.msra.mxu0 0.0
    %1552 = vmatprep.subr.mxu0 0.0
    %1553 = vmatpush2.msra.mxu0 0.0
    %1554 = vmatprep.subr.mxu0 0.0
    %1555 = vmatpush2.msra.mxu0 0.0
    %1556 = vmatprep.subr.mxu0 0.0
    %1557 = vmatpush2.msra.mxu0 0.0
    %1558 = vmatprep.subr.mxu0 0.0
    %1559 = vmatpush2.msra.mxu0 0.0
    %1560 = vmatprep.subr.mxu0 0.0
    %1561 = vmatpush2.msra.mxu0 0.0
    %1562 = vmatprep.subr.mxu0 0.0
    %1563 = vmatpush2.msra.mxu0 0.0
    %1564 = vmatprep.subr.mxu0 0.0
    %1565 = vmatpush2.msra.mxu0 0.0
    %1566 = vmatprep.subr.mxu0 0.0
    %1567 = vmatpush2.msra.mxu0 0.0
    %1568 = vmatprep.subr.mxu0 0.0
    %1569 = vmatpush2.msra.mxu0 0.0
    %1570 = vmatprep.subr.mxu0 0.0
    %1571 = vmatpush2.msra.mxu0 0.0
    %1572 = vmatprep.subr.mxu0 0.0
    %1573 = vmatpush2.msra.mxu0 0.0
    %1574 = vmatprep.subr.mxu0 0.0
    %1575 = vmatpush2.msra.mxu0 0.0
    %1576 = vmatprep.subr.mxu0 0.0
    %1577 = vmatpush2.msra.mxu0 0.0
    %1578 = vmatprep.mubr.f32.mxu0 0.0
    %1579 = vmatmul.mubr.f32.gmra.mxu0 %v1509
    %v1580 = vpop.f32.mrf.mxu0
    %v1581 = vadd.f32 %v1507, %v1580
    %v1582 = vpop.f32.mrf.mxu0
    %1583 = vmatprep.mubr.f32.mxu0 0.0
    %1584 = vmatmul.mubr.f32.gmra.mxu0 %v1512
    %v1585 = vpop.f32.mrf.mxu0
    %v1586 = vadd.f32 %v1507, %v1585
    %v1587 = vpop.f32.mrf.mxu0
    %1588 = vdwg.mxu0
    %v1589 = vadd.f32 %v40, %v1581
    %v1590 = vadd.f32 %v41, %v1586
    %v1591 = vsel %vm67, %v1589, 0.0
    %1592 = vadd.xlane.f32.xlu0 %v1591
    %v1593 = vpop.xlane.xlu0 %1592
    %v1594 = vsel %vm67, %v1590, 0.0
    %1595 = vadd.xlane.f32.xlu0 %v1594
    %v1596 = vpop.xlane.xlu0 %1595
    %v1597 = vrcp.pop 32.0
    %v1598 = vmul.f32 %v1593, %v1597
    %v1599 = vmul.f32 %v1596, %v1597
    %v1600 = vsub.f32 %v1589, %v1598
    %v1601 = vsub.f32 %v1590, %v1599
    %v1602 = vmul.f32 %v1600, %v1600
    %v1603 = vmul.f32 %v1601, %v1601
    %v1604 = vsel %vm67, %v1602, 0.0
    %1605 = vadd.xlane.f32.xlu0 %v1604
    %v1606 = vpop.xlane.xlu0 %1605
    %v1607 = vsel %vm67, %v1603, 0.0
    %1608 = vadd.xlane.f32.xlu0 %v1607
    %v1609 = vpop.xlane.xlu0 %1608
    %v1610 = vmul.f32 %v1606, %v1597
    %v1611 = vmul.f32 %v1609, %v1597
    %v1612 = vadd.f32 %v1610, 1e-05
    %v1613 = vadd.f32 %v1611, 1e-05
    %v1614 = vrsqrt.pop %v1612
    %v1615 = vrsqrt.pop %v1613
    %v1616 = vmul.f32 %v1600, %v1614
    %v1617 = vmul.f32 %v1601, %v1615
    %v1618 = vlaneseq
    %v1619 = vshrl.u32 %v1618, 7
    %v1620 = vsub.s32 4, %v1619
    %v1621 = vrot.slane %v62, %v1620
    %v1622 = vmul.f32 %v1616, %v1621
    %v1623 = vmul.f32 %v1617, %v1621
    %v1624 = vlaneseq
    %v1625 = vshrl.u32 %v1624, 7
    %v1626 = vsub.s32 5, %v1625
    %v1627 = vrot.slane %v62, %v1626
    %v1628 = vadd.f32 %v1622, %v1627
    %v1629 = vadd.f32 %v1623, %v1627
    %v1630 = vlaneseq
    %v1631 = vshrl.u32 %v1630, 7
    %v1632 = vsub.s32 2, %v1631
    %v1633 = vrot.slane %v62, %v1632
    %v1635 = vsel %vm67, %v1628, 0
    %v1638 = vsel %vm67, %v1629, 0
    %1640 = vmatprep.subr.mxu0 0.0
    %1641 = vmatpush1.msra.mxu0 0.0
    %1642 = vmatprep.subr.mxu0 0.0
    %1643 = vmatpush1.msra.mxu0 0.0
    %1644 = vmatprep.subr.mxu0 0.0
    %1645 = vmatpush1.msra.mxu0 0.0
    %1646 = vmatprep.subr.mxu0 0.0
    %1647 = vmatpush1.msra.mxu0 0.0
    %1648 = vmatprep.subr.mxu0 0.0
    %1649 = vmatpush1.msra.mxu0 0.0
    %1650 = vmatprep.subr.mxu0 0.0
    %1651 = vmatpush1.msra.mxu0 0.0
    %1652 = vmatprep.subr.mxu0 0.0
    %1653 = vmatpush1.msra.mxu0 0.0
    %1654 = vmatprep.subr.mxu0 0.0
    %1655 = vmatpush1.msra.mxu0 0.0
    %1656 = vmatprep.subr.mxu0 0.0
    %1657 = vmatpush1.msra.mxu0 0.0
    %1658 = vmatprep.subr.mxu0 0.0
    %1659 = vmatpush1.msra.mxu0 0.0
    %1660 = vmatprep.subr.mxu0 0.0
    %1661 = vmatpush1.msra.mxu0 0.0
    %1662 = vmatprep.subr.mxu0 0.0
    %1663 = vmatpush1.msra.mxu0 0.0
    %1664 = vmatprep.subr.mxu0 0.0
    %1665 = vmatpush1.msra.mxu0 %v53
    %1666 = vmatprep.subr.mxu0 0.0
    %1667 = vmatpush1.msra.mxu0 %v52
    %1668 = vmatprep.subr.mxu0 0.0
    %1669 = vmatpush1.msra.mxu0 %v51
    %1670 = vmatprep.subr.mxu0 0.0
    %1671 = vmatpush1.msra.mxu0 %v50
    %1672 = vmatprep.subr.mxu0 0.0
    %1673 = vmatpush2.msra.mxu0 0.0
    %1674 = vmatprep.subr.mxu0 0.0
    %1675 = vmatpush2.msra.mxu0 0.0
    %1676 = vmatprep.subr.mxu0 0.0
    %1677 = vmatpush2.msra.mxu0 0.0
    %1678 = vmatprep.subr.mxu0 0.0
    %1679 = vmatpush2.msra.mxu0 0.0
    %1680 = vmatprep.subr.mxu0 0.0
    %1681 = vmatpush2.msra.mxu0 0.0
    %1682 = vmatprep.subr.mxu0 0.0
    %1683 = vmatpush2.msra.mxu0 0.0
    %1684 = vmatprep.subr.mxu0 0.0
    %1685 = vmatpush2.msra.mxu0 0.0
    %1686 = vmatprep.subr.mxu0 0.0
    %1687 = vmatpush2.msra.mxu0 0.0
    %1688 = vmatprep.subr.mxu0 0.0
    %1689 = vmatpush2.msra.mxu0 0.0
    %1690 = vmatprep.subr.mxu0 0.0
    %1691 = vmatpush2.msra.mxu0 0.0
    %1692 = vmatprep.subr.mxu0 0.0
    %1693 = vmatpush2.msra.mxu0 0.0
    %1694 = vmatprep.subr.mxu0 0.0
    %1695 = vmatpush2.msra.mxu0 0.0
    %1696 = vmatprep.subr.mxu0 0.0
    %1697 = vmatpush2.msra.mxu0 0.0
    %1698 = vmatprep.subr.mxu0 0.0
    %1699 = vmatpush2.msra.mxu0 0.0
    %1700 = vmatprep.subr.mxu0 0.0
    %1701 = vmatpush2.msra.mxu0 0.0
    %1702 = vmatprep.subr.mxu0 0.0
    %1703 = vmatpush2.msra.mxu0 0.0
    %1704 = vmatprep.mubr.f32.mxu0 0.0
    %1705 = vmatmul.mubr.f32.gmra.mxu0 %v1635
    %v1706 = vpop.f32.mrf.mxu0
    %v1707 = vadd.f32 %v1633, %v1706
    %v1708 = vpop.f32.mrf.mxu0
    %1709 = vmatprep.mubr.f32.mxu0 0.0
    %1710 = vmatmul.mubr.f32.gmra.mxu0 %v1638
    %v1711 = vpop.f32.mrf.mxu0
    %v1712 = vadd.f32 %v1633, %v1711
    %v1713 = vpop.f32.mrf.mxu0
    %1714 = vdwg.mxu0
    %v1715 = vmax.f32 %v1707, 0.0
    %v1716 = vmax.f32 %v1712, 0.0
    %v1717 = vlaneseq
    %v1718 = vshrl.u32 %v1717, 7
    %v1719 = vsub.s32 3, %v1718
    %v1720 = vrot.slane %v62, %v1719
    %vm1721 = vcmask 523264
    %v1723 = vsel %vm1721, %v1715, 0
    %v1726 = vsel %vm1721, %v1716, 0
    %1728 = vmatprep.subr.mxu0 0.0
    %1729 = vmatpush1.msra.mxu0 0.0
    %1730 = vmatprep.subr.mxu0 0.0
    %1731 = vmatpush1.msra.mxu0 0.0
    %1732 = vmatprep.subr.mxu0 0.0
    %1733 = vmatpush1.msra.mxu0 0.0
    %1734 = vmatprep.subr.mxu0 0.0
    %1735 = vmatpush1.msra.mxu0 0.0
    %1736 = vmatprep.subr.mxu0 0.0
    %1737 = vmatpush1.msra.mxu0 0.0
    %1738 = vmatprep.subr.mxu0 0.0
    %1739 = vmatpush1.msra.mxu0 0.0
    %1740 = vmatprep.subr.mxu0 0.0
    %1741 = vmatpush1.msra.mxu0 0.0
    %1742 = vmatprep.subr.mxu0 0.0
    %1743 = vmatpush1.msra.mxu0 0.0
    %1744 = vmatprep.subr.mxu0 0.0
    %1745 = vmatpush1.msra.mxu0 %v61
    %1746 = vmatprep.subr.mxu0 0.0
    %1747 = vmatpush1.msra.mxu0 %v60
    %1748 = vmatprep.subr.mxu0 0.0
    %1749 = vmatpush1.msra.mxu0 %v59
    %1750 = vmatprep.subr.mxu0 0.0
    %1751 = vmatpush1.msra.mxu0 %v58
    %1752 = vmatprep.subr.mxu0 0.0
    %1753 = vmatpush1.msra.mxu0 %v57
    %1754 = vmatprep.subr.mxu0 0.0
    %1755 = vmatpush1.msra.mxu0 %v56
    %1756 = vmatprep.subr.mxu0 0.0
    %1757 = vmatpush1.msra.mxu0 %v55
    %1758 = vmatprep.subr.mxu0 0.0
    %1759 = vmatpush1.msra.mxu0 %v54
    %1760 = vmatprep.subr.mxu0 0.0
    %1761 = vmatpush2.msra.mxu0 0.0
    %1762 = vmatprep.subr.mxu0 0.0
    %1763 = vmatpush2.msra.mxu0 0.0
    %1764 = vmatprep.subr.mxu0 0.0
    %1765 = vmatpush2.msra.mxu0 0.0
    %1766 = vmatprep.subr.mxu0 0.0
    %1767 = vmatpush2.msra.mxu0 0.0
    %1768 = vmatprep.subr.mxu0 0.0
    %1769 = vmatpush2.msra.mxu0 0.0
    %1770 = vmatprep.subr.mxu0 0.0
    %1771 = vmatpush2.msra.mxu0 0.0
    %1772 = vmatprep.subr.mxu0 0.0
    %1773 = vmatpush2.msra.mxu0 0.0
    %1774 = vmatprep.subr.mxu0 0.0
    %1775 = vmatpush2.msra.mxu0 0.0
    %1776 = vmatprep.subr.mxu0 0.0
    %1777 = vmatpush2.msra.mxu0 0.0
    %1778 = vmatprep.subr.mxu0 0.0
    %1779 = vmatpush2.msra.mxu0 0.0
    %1780 = vmatprep.subr.mxu0 0.0
    %1781 = vmatpush2.msra.mxu0 0.0
    %1782 = vmatprep.subr.mxu0 0.0
    %1783 = vmatpush2.msra.mxu0 0.0
    %1784 = vmatprep.subr.mxu0 0.0
    %1785 = vmatpush2.msra.mxu0 0.0
    %1786 = vmatprep.subr.mxu0 0.0
    %1787 = vmatpush2.msra.mxu0 0.0
    %1788 = vmatprep.subr.mxu0 0.0
    %1789 = vmatpush2.msra.mxu0 0.0
    %1790 = vmatprep.subr.mxu0 0.0
    %1791 = vmatpush2.msra.mxu0 0.0
    %1792 = vmatprep.mubr.f32.mxu0 0.0
    %1793 = vmatmul.mubr.f32.gmra.mxu0 %v1723
    %v1794 = vpop.f32.mrf.mxu0
    %v1795 = vadd.f32 %v1720, %v1794
    %v1796 = vpop.f32.mrf.mxu0
    %1797 = vmatprep.mubr.f32.mxu0 0.0
    %1798 = vmatmul.mubr.f32.gmra.mxu0 %v1726
    %v1799 = vpop.f32.mrf.mxu0
    %v1800 = vadd.f32 %v1720, %v1799
    %v1801 = vpop.f32.mrf.mxu0
    %1802 = vdwg.mxu0
    %v1803 = vadd.f32 %v1628, %v1795
    %v1804 = vadd.f32 %v1629, %v1800
    %v1805 = vsel %vm67, %v1803, 0.0
    %1806 = vadd.xlane.f32.xlu0 %v1805
    %v1807 = vpop.xlane.xlu0 %1806
    %v1808 = vsel %vm67, %v1804, 0.0
    %1809 = vadd.xlane.f32.xlu0 %v1808
    %v1810 = vpop.xlane.xlu0 %1809
    %v1811 = vmul.f32 %v1807, %v1597
    %v1812 = vmul.f32 %v1810, %v1597
    %v1813 = vsub.f32 %v1803, %v1811
    %v1814 = vsub.f32 %v1804, %v1812
    %v1815 = vmul.f32 %v1813, %v1813
    %v1816 = vmul.f32 %v1814, %v1814
    %v1817 = vsel %vm67, %v1815, 0.0
    %1818 = vadd.xlane.f32.xlu0 %v1817
    %v1819 = vpop.xlane.xlu0 %1818
    %v1820 = vsel %vm67, %v1816, 0.0
    %1821 = vadd.xlane.f32.xlu0 %v1820
    %v1822 = vpop.xlane.xlu0 %1821
    %v1823 = vmul.f32 %v1819, %v1597
    %v1824 = vmul.f32 %v1822, %v1597
    %v1825 = vadd.f32 %v1823, 1e-05
    %v1826 = vadd.f32 %v1824, 1e-05
    %v1827 = vrsqrt.pop %v1825
    %v1828 = vrsqrt.pop %v1826
    %v1829 = vmul.f32 %v1813, %v1827
    %v1830 = vmul.f32 %v1814, %v1828
    %v1831 = vlaneseq
    %v1832 = vshrl.u32 %v1831, 7
    %v1833 = vsub.s32 6, %v1832
    %v1834 = vrot.slane %v62, %v1833
    %v1835 = vmul.f32 %v1829, %v1834
    %v1836 = vmul.f32 %v1830, %v1834
    %v1837 = vlaneseq
    %v1838 = vshrl.u32 %v1837, 7
    %v1839 = vsub.s32 7, %v1838
    %v1840 = vrot.slane %v62, %v1839
    %v1841 = vadd.f32 %v1835, %v1840
    %v1842 = vadd.f32 %v1836, %v1840
    %1843 = vst.msk [vmem:[#allocation7] sm:$0xff] %vm67, %v1841
    %1844 = vst.msk [vmem:[#allocation7 + $0x8] sm:$0xff] %vm67, %v1842
    // Predicated region
    $region18: #{tpu_custom_call.1} parent=1 // pred_check
      _
    $region19: #{tpu_custom_call.1} parent=1 // pred_check_branch
      %1846 = sbr.rel (0) target = $region21
    $region20: #{tpu_custom_call.1} parent=1 // pred_region
      %s1848 = ssub.s32 256, 256
      %1849 = vsyncadd [#allocation4], %s1848
      %s1850 = sshll.u32 [#allocation7], 4
      %s1851 = int_to_ptr.vmem [resolvable:$true] %s1850
      %1856 = dma.vmem_to_hbm [thread:$0]  %s1851, 256, %s2, [#allocation4], 128, 128, 8
    $region21: #{tpu_custom_call.1} parent=1 // pred_fallthru
      _
    // Predicated region
    $region22: #{tpu_custom_call.1} parent=1 // pred_check
      _
    $region23: #{tpu_custom_call.1} parent=1 // pred_check_branch
      %1858 = sbr.rel (0) target = $region25
    $region24: #{tpu_custom_call.1} parent=1 // pred_region
      %1859 = dma.done [#allocation4], 256
    $region25: #{tpu_custom_call.1} parent=1 // pred_fallthru
      _
    %1860 = vsyncpa [#allocation3], 1
    %1861 = vsyncpa [#allocation6], 1
    %1862 = vsyncpa [#allocation4], 1

</llo_original>
